<compile_context>
chip_gen: v7x
topology: tpu7x:2x2x1
jax: 0.10.0
libtpu: 0.0.40
codegen_flags: <defaults>
</compile_context>

<pallas_src>
import functools

import jax
import jax.numpy as jnp
from jax.experimental import pallas as pl
from jax.experimental.pallas import tpu as pltpu

NO_CLASSES = 24
# Scaled-down stand-ins for the real backbone feature widths (2048 / 512);
# the backbone bodies are external so their output width is a free knob here.
TIME_FTRS = 256
SPEC_FTRS = 128
NUM_FTRS = TIME_FTRS + SPEC_FTRS
HID = NUM_FTRS // 2            # 192  (fc hidden width in the PyTorch module)

# Hardware-friendly padded sizes (lane-dense / (8,128)-aligned).
K_T, K_T_PAD = 12 * 5, 128       # time stem contraction dim (tap-major)
C_T, C_T_PAD = 32, 128           # time stem output channels
K_S, K_S_PAD = 12 * 7 * 7, 640   # spec stem contraction dim (tap-major)
C_S, C_S_PAD = 64, 128           # spec stem output channels
HID_PAD = 256                    # fc hidden, padded
OUT_PAD = 128                    # class logits, padded (lane-dense output slab)

HI = jax.lax.Precision.HIGHEST


def _vmem():
    return pl.BlockSpec(memory_space=pltpu.MemorySpace.VMEM)


def _pad_to(x, shape):
    pads = [(0, t - s) for s, t in zip(x.shape, shape)]
    return jnp.pad(x, pads) if any(p for _, p in pads) else x


# ----------------------------------------------------------------------------
# Single fused kernel: both conv stems + backbone-stub pooling + folded
# ensemble head, all in VMEM.  9 MXU pushes with gate, 7 without.
# ----------------------------------------------------------------------------
def fused_kernel(gate, tp_ref, sp_ref, pool_t_ref, pool_s_ref,
                 wt_ref, bt_ref, ws_ref, bs_ref, *rest):
    if gate:
        (gt_ref, gs_ref, bg_ref,
         at_ref, as_ref, b1_ref, w2_ref, b2_ref, y_ref) = rest
    else:
        (at_ref, as_ref, b1_ref, w2_ref, b2_ref, y_ref) = rest

    # ---- time stem: one 2-D matmul over (B*Pt, K_T_PAD) patches + ReLU ----
    zt = jnp.maximum(
        jnp.dot(tp_ref[...], wt_ref[...],
                preferred_element_type=jnp.float32) + bt_ref[...], 0.0)
    # Global average pool expressed as a (B_PAD, B*Pt) pooling-matrix matmul.
    pooled_t = jnp.dot(pool_t_ref[...], zt,
                       preferred_element_type=jnp.float32)     # (B_PAD, C_T_PAD)

    # ---- spec stem ---------------------------------------------------------
    zs = jnp.maximum(
        jnp.dot(sp_ref[...], ws_ref[...],
                preferred_element_type=jnp.float32) + bs_ref[...], 0.0)
    pooled_s = jnp.dot(pool_s_ref[...], zs,
                       preferred_element_type=jnp.float32)     # (B_PAD, C_S_PAD)

    # ---- folded head: u_t = pooled_t @ (proj_t @ w1_t) etc. ----------------
    # (NOTE: in-kernel matmuls use Mosaic's default f32 path; the folded
    #  weights were computed at HIGHEST precision in the wrapper.)
    u_t = jnp.dot(pooled_t, at_ref[...], preferred_element_type=jnp.float32)
    u_s = jnp.dot(pooled_s, as_ref[...], preferred_element_type=jnp.float32)

    if gate:
        # gate_fc(cat(ht, hs)) via folded split weights (identical math).
        gl = (jnp.dot(pooled_t, gt_ref[...], preferred_element_type=jnp.float32)
              + jnp.dot(pooled_s, gs_ref[...], preferred_element_type=jnp.float32)
              + bg_ref[...])                                   # (B_PAD, 2)
        # Closed-form 2-way softmax: no cross-lane max/sum reductions.
        d = gl[:, 1:2] - gl[:, 0:1]
        g0 = 1.0 / (1.0 + jnp.exp(d))
        g1 = 1.0 - g0
        h = g0 * u_t + g1 * u_s + b1_ref[...]                  # (B_PAD, HID_PAD)
    else:
        h = u_t + u_s + b1_ref[...]

    y_ref[...] = jnp.dot(h, w2_ref[...],
                         preferred_element_type=jnp.float32) + b2_ref[...]


def run_fused(args, gate, b_pad):
    return pl.pallas_call(
        functools.partial(fused_kernel, gate),
        out_shape=jax.ShapeDtypeStruct((b_pad, OUT_PAD), jnp.float32),
        in_specs=[_vmem()] * len(args),
        out_specs=_vmem(),
    )(*args)


# ----------------------------------------------------------------------------
# im2col via static strided slices, channels-last so the only transpose is of
# the tiny raw input; taps are stacked on the last axis (feature order is
# (tap, c), consistently used by kernel, reference and weight definition).
# ----------------------------------------------------------------------------
def im2col_1d(x, k, stride, pad):
    B, C, L = x.shape
    xcl = jnp.transpose(x, (0, 2, 1))                              # (B, L, C) tiny
    xp = jnp.pad(xcl, ((0, 0), (pad, pad), (0, 0)))
    Lout = (L + 2 * pad - k) // stride + 1
    cols = [xp[:, i:i + stride * Lout:stride, :] for i in range(k)]
    return jnp.concatenate(cols, axis=-1)                          # (B, Lout, k*C)


def im2col_2d(x, k, stride, pad):
    B, C, H, W = x.shape
    xcl = jnp.transpose(x, (0, 2, 3, 1))                           # (B, H, W, C) tiny
    xp = jnp.pad(xcl, ((0, 0), (pad, pad), (pad, pad), (0, 0)))
    Hout = (H + 2 * pad - k) // stride + 1
    Wout = (W + 2 * pad - k) // stride + 1
    cols = [xp[:, di:di + stride * Hout:stride,
               dj:dj + stride * Wout:stride, :]
            for di in range(k) for dj in range(k)]                 # (B,Hout,Wout,C)
    pat = jnp.concatenate(cols, axis=-1)                           # (B,Hout,Wout,k*k*C)
    return pat.reshape(B, Hout * Wout, k * k * C)


# ----------------------------------------------------------------------------
# Deterministic in-script parameters (logical / unpadded sizes).
# ----------------------------------------------------------------------------
def init_params(key):
    ks = iter(jax.random.split(key, 16))

    def lin(fan_in, fan_out):
        return jax.random.normal(next(ks), (fan_in, fan_out), jnp.float32) / jnp.sqrt(fan_in)

    def bias(n):
        return 0.01 * jax.random.normal(next(ks), (1, n), jnp.float32)

    p = {}
    # time stem: Conv1d(12, 32, k=5, s=2, p=2), weight stored as (k*C_in, C_out)
    p["time_w"] = lin(K_T, C_T)
    p["time_b"] = bias(C_T)
    p["time_proj"] = lin(C_T, TIME_FTRS)       # stand-in for xresnet1d50 body
    # spec stem: Conv2d(12, 64, k=7, s=2, p=3)
    p["spec_w"] = lin(K_S, C_S)
    p["spec_b"] = bias(C_S)
    p["spec_proj"] = lin(C_S, SPEC_FTRS)       # stand-in for se_resnet34 body
    # gate_fc: Linear(NUM_FTRS, 2), split along the concat axis
    p["wg_t"] = lin(TIME_FTRS, 2)
    p["wg_s"] = lin(SPEC_FTRS, 2)
    p["bg"] = bias(2)
    # fc: Linear(NUM_FTRS, NUM_FTRS//2) -> Linear(NUM_FTRS//2, NO_CLASSES)
    p["w1_t"] = lin(TIME_FTRS, HID)
    p["w1_s"] = lin(SPEC_FTRS, HID)
    p["b1"] = bias(HID)
    p["w2"] = lin(HID, NO_CLASSES)
    p["b2"] = bias(NO_CLASSES)
    return p


# ----------------------------------------------------------------------------
# Forward: im2col + padding + weight folding in JAX, everything else in one
# Pallas kernel.
# ----------------------------------------------------------------------------
@functools.partial(jax.jit, static_argnames=("gate",))
def forward(x_sig, x_spec, p, gate=True):
    B = x_sig.shape[0]
    b_pad = max(8, ((B + 7) // 8) * 8)                 # full f32 sublane

    tp = im2col_1d(x_sig, k=5, stride=2, pad=2)        # (B, Pt, 60)
    sp = im2col_2d(x_spec, k=7, stride=2, pad=3)       # (B, Ps, 588)
    Pt, Ps = tp.shape[1], sp.shape[1]

    # Lane-pad contraction dims and fold batch into the matmul row dim.
    tp = _pad_to(tp, (B, Pt, K_T_PAD)).reshape(B * Pt, K_T_PAD)
    sp = _pad_to(sp, (B, Ps, K_S_PAD)).reshape(B * Ps, K_S_PAD)

    # Global-average-pool as a matmul: (b_pad, B*P) block matrix of 1/P,
    # zero rows beyond the real batch.
    pool_t = _pad_to(jnp.repeat(jnp.eye(B, dtype=jnp.float32), Pt, axis=1) / Pt,
                     (b_pad, B * Pt))
    pool_s = _pad_to(jnp.repeat(jnp.eye(B, dtype=jnp.float32), Ps, axis=1) / Ps,
                     (b_pad, B * Ps))

    # Zero-pad conv weights to aligned sizes (padding adds exact zeros).
    wt = _pad_to(p["time_w"], (K_T_PAD, C_T_PAD))
    bt = _pad_to(p["time_b"], (1, C_T_PAD))
    ws = _pad_to(p["spec_w"], (K_S_PAD, C_S_PAD))
    bs = _pad_to(p["spec_b"], (1, C_S_PAD))

    # Fold the backbone-stub projection into the head weights (exact
    # reassociation; computed once at HIGHEST precision).
    projt = _pad_to(p["time_proj"], (C_T_PAD, TIME_FTRS))
    projs = _pad_to(p["spec_proj"], (C_S_PAD, SPEC_FTRS))
    a_t = jnp.dot(projt, _pad_to(p["w1_t"], (TIME_FTRS, HID_PAD)), precision=HI)
    a_s = jnp.dot(projs, _pad_to(p["w1_s"], (SPEC_FTRS, HID_PAD)), precision=HI)
    b1 = _pad_to(p["b1"], (1, HID_PAD))
    w2 = _pad_to(p["w2"], (HID_PAD, OUT_PAD))
    b2 = _pad_to(p["b2"], (1, OUT_PAD))

    args = [tp, sp, pool_t, pool_s, wt, bt, ws, bs]
    if gate:
        g_t = jnp.dot(projt, p["wg_t"], precision=HI)  # (C_T_PAD, 2)
        g_s = jnp.dot(projs, p["wg_s"], precision=HI)  # (C_S_PAD, 2)
        args += [g_t, g_s, p["bg"]]
    args += [a_t, a_s, b1, w2, b2]

    y_pad = run_fused(args, gate, b_pad)               # (b_pad, 128) lane-dense slab
    return y_pad[:B, :NO_CLASSES]


def forward_ref(x_sig, x_spec, p, gate):
    """Pure-JAX reference (unpadded, unfused, concat-based), HIGHEST precision."""
    tp = im2col_1d(x_sig, k=5, stride=2, pad=2)
    sp = im2col_2d(x_spec, k=7, stride=2, pad=3)

    def stem(patches, w, b, proj):
        z = jnp.maximum(jnp.einsum("bpk,kc->bpc", patches, w, precision=HI) + b, 0.0)
        return jnp.dot(jnp.mean(z, axis=1), proj, precision=HI)

    ht = stem(tp, p["time_w"], p["time_b"], p["time_proj"])
    hs = stem(sp, p["spec_w"], p["spec_b"], p["spec_proj"])
    if gate:
        hcat = jnp.concatenate([ht, hs], axis=1)
        wg = jnp.concatenate([p["wg_t"], p["wg_s"]], axis=0)
        g = jax.nn.softmax(jnp.dot(hcat, wg, precision=HI) + p["bg"], axis=1)
        h_enc = jnp.concatenate([ht * g[:, 0:1], hs * g[:, 1:2]], axis=1)
    else:
        h_enc = jnp.concatenate([ht, hs], axis=1)
    w1 = jnp.concatenate([p["w1_t"], p["w1_s"]], axis=0)
    h = jnp.dot(h_enc, w1, precision=HI) + p["b1"]
    return jnp.dot(h, p["w2"], precision=HI) + p["b2"]


if __name__ == "__main__":
    key = jax.random.PRNGKey(0)
    k_sig, k_spec, k_par = jax.random.split(key, 3)

    B, L, H, W = 2, 64, 16, 16
    x_sig = jax.random.normal(k_sig, (B, 12, L), jnp.float32)        # NCL
    x_spec = jax.random.normal(k_spec, (B, 12, H, W), jnp.float32)   # NCHW
    params = init_params(k_par)

    for gate in (True, False):
        y = forward(x_sig, x_spec, params, gate=gate)
        y = jax.block_until_ready(y)
        y_ref = forward_ref(x_sig, x_spec, params, gate)
        assert y.shape == (B, NO_CLASSES), y.shape
        err = float(jnp.max(jnp.abs(y - y_ref)))
        assert jnp.allclose(y, y_ref, atol=1e-4, rtol=1e-4), (gate, err)

    print("KERNEL_OK")
</pallas_src>

<mosaic_0001>
module attributes {stable_mosaic.version = 11 : i64} {
  func.func @fused_kernel(%arg0: memref<64x128xf32, #tpu.memory_space<vmem>>, %arg1: memref<128x640xf32, #tpu.memory_space<vmem>>, %arg2: memref<8x64xf32, #tpu.memory_space<vmem>>, %arg3: memref<8x128xf32, #tpu.memory_space<vmem>>, %arg4: memref<128x128xf32, #tpu.memory_space<vmem>>, %arg5: memref<1x128xf32, #tpu.memory_space<vmem>>, %arg6: memref<640x128xf32, #tpu.memory_space<vmem>>, %arg7: memref<1x128xf32, #tpu.memory_space<vmem>>, %arg8: memref<128x2xf32, #tpu.memory_space<vmem>>, %arg9: memref<128x2xf32, #tpu.memory_space<vmem>>, %arg10: memref<1x2xf32, #tpu.memory_space<vmem>>, %arg11: memref<128x256xf32, #tpu.memory_space<vmem>>, %arg12: memref<128x256xf32, #tpu.memory_space<vmem>>, %arg13: memref<1x256xf32, #tpu.memory_space<vmem>>, %arg14: memref<256x128xf32, #tpu.memory_space<vmem>>, %arg15: memref<1x128xf32, #tpu.memory_space<vmem>>, %arg16: memref<8x128xf32, #tpu.memory_space<vmem>>) attributes {dimension_semantics = [], scalar_prefetch = 0 : i64, scratch_operands = 0 : i64, tpu.core_type = #tpu.core_type<tc>} {
    %c0 = arith.constant 0 : index
    %c0_0 = arith.constant 0 : index
    %0 = vector.load %arg0[%c0, %c0_0] : memref<64x128xf32, #tpu.memory_space<vmem>>, vector<64x128xf32>
    %c0_1 = arith.constant 0 : index
    %c0_2 = arith.constant 0 : index
    %1 = vector.load %arg4[%c0_1, %c0_2] : memref<128x128xf32, #tpu.memory_space<vmem>>, vector<128x128xf32>
    %cst = arith.constant dense<0.000000e+00> : vector<64x128xf32>
    %2 = tpu.matmul %0, %1, %cst {dimension_numbers = #tpu.dot_dimension_numbers<[1], [0], [0], [1], [0, 0, 1, 1], [], []>} : vector<64x128xf32>, vector<128x128xf32>, vector<64x128xf32> -> vector<64x128xf32>
    %c0_3 = arith.constant 0 : index
    %c0_4 = arith.constant 0 : index
    %3 = vector.load %arg5[%c0_3, %c0_4] : memref<1x128xf32, #tpu.memory_space<vmem>>, vector<1x128xf32>
    %4 = vector.broadcast %3 : vector<1x128xf32> to vector<64x128xf32>
    %5 = arith.addf %2, %4 : vector<64x128xf32>
    %cst_5 = arith.constant 0.000000e+00 : f32
    %6 = vector.broadcast %cst_5 : f32 to vector<64x128xf32>
    %7 = arith.maximumf %5, %6 : vector<64x128xf32>
    %c0_6 = arith.constant 0 : index
    %c0_7 = arith.constant 0 : index
    %8 = vector.load %arg2[%c0_6, %c0_7] : memref<8x64xf32, #tpu.memory_space<vmem>>, vector<8x64xf32>
    %cst_8 = arith.constant dense<0.000000e+00> : vector<8x128xf32>
    %9 = tpu.matmul %8, %7, %cst_8 {dimension_numbers = #tpu.dot_dimension_numbers<[1], [0], [0], [1], [0, 0, 1, 1], [], []>} : vector<8x64xf32>, vector<64x128xf32>, vector<8x128xf32> -> vector<8x128xf32>
    %c0_9 = arith.constant 0 : index
    %c0_10 = arith.constant 0 : index
    %10 = vector.load %arg1[%c0_9, %c0_10] : memref<128x640xf32, #tpu.memory_space<vmem>>, vector<128x640xf32>
    %c0_11 = arith.constant 0 : index
    %c0_12 = arith.constant 0 : index
    %11 = vector.load %arg6[%c0_11, %c0_12] : memref<640x128xf32, #tpu.memory_space<vmem>>, vector<640x128xf32>
    %cst_13 = arith.constant dense<0.000000e+00> : vector<128x128xf32>
    %12 = tpu.matmul %10, %11, %cst_13 {dimension_numbers = #tpu.dot_dimension_numbers<[1], [0], [0], [1], [0, 0, 1, 1], [], []>} : vector<128x640xf32>, vector<640x128xf32>, vector<128x128xf32> -> vector<128x128xf32>
    %c0_14 = arith.constant 0 : index
    %c0_15 = arith.constant 0 : index
    %13 = vector.load %arg7[%c0_14, %c0_15] : memref<1x128xf32, #tpu.memory_space<vmem>>, vector<1x128xf32>
    %14 = vector.broadcast %13 : vector<1x128xf32> to vector<128x128xf32>
    %15 = arith.addf %12, %14 : vector<128x128xf32>
    %cst_16 = arith.constant 0.000000e+00 : f32
    %16 = vector.broadcast %cst_16 : f32 to vector<128x128xf32>
    %17 = arith.maximumf %15, %16 : vector<128x128xf32>
    %c0_17 = arith.constant 0 : index
    %c0_18 = arith.constant 0 : index
    %18 = vector.load %arg3[%c0_17, %c0_18] : memref<8x128xf32, #tpu.memory_space<vmem>>, vector<8x128xf32>
    %cst_19 = arith.constant dense<0.000000e+00> : vector<8x128xf32>
    %19 = tpu.matmul %18, %17, %cst_19 {dimension_numbers = #tpu.dot_dimension_numbers<[1], [0], [0], [1], [0, 0, 1, 1], [], []>} : vector<8x128xf32>, vector<128x128xf32>, vector<8x128xf32> -> vector<8x128xf32>
    %c0_20 = arith.constant 0 : index
    %c0_21 = arith.constant 0 : index
    %20 = vector.load %arg11[%c0_20, %c0_21] : memref<128x256xf32, #tpu.memory_space<vmem>>, vector<128x256xf32>
    %cst_22 = arith.constant dense<0.000000e+00> : vector<8x256xf32>
    %21 = tpu.matmul %9, %20, %cst_22 {dimension_numbers = #tpu.dot_dimension_numbers<[1], [0], [0], [1], [0, 0, 1, 1], [], []>} : vector<8x128xf32>, vector<128x256xf32>, vector<8x256xf32> -> vector<8x256xf32>
    %c0_23 = arith.constant 0 : index
    %c0_24 = arith.constant 0 : index
    %22 = vector.load %arg12[%c0_23, %c0_24] : memref<128x256xf32, #tpu.memory_space<vmem>>, vector<128x256xf32>
    %cst_25 = arith.constant dense<0.000000e+00> : vector<8x256xf32>
    %23 = tpu.matmul %19, %22, %cst_25 {dimension_numbers = #tpu.dot_dimension_numbers<[1], [0], [0], [1], [0, 0, 1, 1], [], []>} : vector<8x128xf32>, vector<128x256xf32>, vector<8x256xf32> -> vector<8x256xf32>
    %c0_26 = arith.constant 0 : index
    %c0_27 = arith.constant 0 : index
    %24 = vector.load %arg8[%c0_26, %c0_27] : memref<128x2xf32, #tpu.memory_space<vmem>>, vector<128x2xf32>
    %cst_28 = arith.constant dense<0.000000e+00> : vector<8x2xf32>
    %25 = tpu.matmul %9, %24, %cst_28 {dimension_numbers = #tpu.dot_dimension_numbers<[1], [0], [0], [1], [0, 0, 1, 1], [], []>} : vector<8x128xf32>, vector<128x2xf32>, vector<8x2xf32> -> vector<8x2xf32>
    %c0_29 = arith.constant 0 : index
    %c0_30 = arith.constant 0 : index
    %26 = vector.load %arg9[%c0_29, %c0_30] : memref<128x2xf32, #tpu.memory_space<vmem>>, vector<128x2xf32>
    %cst_31 = arith.constant dense<0.000000e+00> : vector<8x2xf32>
    %27 = tpu.matmul %19, %26, %cst_31 {dimension_numbers = #tpu.dot_dimension_numbers<[1], [0], [0], [1], [0, 0, 1, 1], [], []>} : vector<8x128xf32>, vector<128x2xf32>, vector<8x2xf32> -> vector<8x2xf32>
    %28 = arith.addf %25, %27 : vector<8x2xf32>
    %c0_32 = arith.constant 0 : index
    %c0_33 = arith.constant 0 : index
    %29 = vector.load %arg10[%c0_32, %c0_33] : memref<1x2xf32, #tpu.memory_space<vmem>>, vector<1x2xf32>
    %30 = vector.broadcast %29 : vector<1x2xf32> to vector<8x2xf32>
    %31 = arith.addf %28, %30 : vector<8x2xf32>
    %32 = vector.extract_strided_slice %31 {offsets = [0, 1], sizes = [8, 1], strides = [1, 1]} : vector<8x2xf32> to vector<8x1xf32>
    %33 = vector.extract_strided_slice %31 {offsets = [0, 0], sizes = [8, 1], strides = [1, 1]} : vector<8x2xf32> to vector<8x1xf32>
    %34 = arith.subf %32, %33 : vector<8x1xf32>
    %35 = math.exp %34 : vector<8x1xf32>
    %cst_34 = arith.constant 1.000000e+00 : f32
    %36 = vector.broadcast %cst_34 : f32 to vector<8x1xf32>
    %37 = arith.addf %36, %35 : vector<8x1xf32>
    %cst_35 = arith.constant 1.000000e+00 : f32
    %38 = vector.broadcast %cst_35 : f32 to vector<8x1xf32>
    %39 = arith.divf %38, %37 : vector<8x1xf32>
    %cst_36 = arith.constant 1.000000e+00 : f32
    %40 = vector.broadcast %cst_36 : f32 to vector<8x1xf32>
    %41 = arith.subf %40, %39 : vector<8x1xf32>
    %42 = vector.broadcast %39 : vector<8x1xf32> to vector<8x256xf32>
    %43 = arith.mulf %42, %21 : vector<8x256xf32>
    %44 = vector.broadcast %41 : vector<8x1xf32> to vector<8x256xf32>
    %45 = arith.mulf %44, %23 : vector<8x256xf32>
    %46 = arith.addf %43, %45 : vector<8x256xf32>
    %c0_37 = arith.constant 0 : index
    %c0_38 = arith.constant 0 : index
    %47 = vector.load %arg13[%c0_37, %c0_38] : memref<1x256xf32, #tpu.memory_space<vmem>>, vector<1x256xf32>
    %48 = vector.broadcast %47 : vector<1x256xf32> to vector<8x256xf32>
    %49 = arith.addf %46, %48 : vector<8x256xf32>
    %c0_39 = arith.constant 0 : index
    %c0_40 = arith.constant 0 : index
    %50 = vector.load %arg14[%c0_39, %c0_40] : memref<256x128xf32, #tpu.memory_space<vmem>>, vector<256x128xf32>
    %cst_41 = arith.constant dense<0.000000e+00> : vector<8x128xf32>
    %51 = tpu.matmul %49, %50, %cst_41 {dimension_numbers = #tpu.dot_dimension_numbers<[1], [0], [0], [1], [0, 0, 1, 1], [], []>} : vector<8x256xf32>, vector<256x128xf32>, vector<8x128xf32> -> vector<8x128xf32>
    %c0_42 = arith.constant 0 : index
    %c0_43 = arith.constant 0 : index
    %52 = vector.load %arg15[%c0_42, %c0_43] : memref<1x128xf32, #tpu.memory_space<vmem>>, vector<1x128xf32>
    %53 = vector.broadcast %52 : vector<1x128xf32> to vector<8x128xf32>
    %54 = arith.addf %51, %53 : vector<8x128xf32>
    %c0_44 = arith.constant 0 : index
    %c0_45 = arith.constant 0 : index
    %55 = vector.load %arg16[%c0_44, %c0_45] : memref<8x128xf32, #tpu.memory_space<vmem>>, vector<8x128xf32>
    tpu.vector_store %arg16[%c0_44, %c0_45], %54 {strides = array<i32>} : memref<8x128xf32, #tpu.memory_space<vmem>>, vector<8x128xf32>,
    return
  }
}

</mosaic_0001>

<llo_original>
// kernel: forward.1
$region0: #{forward.1}
  #allocation0 [shape = 'u32[]', space=smem, size = 0x4, offset = 0x4, fixed_abs, tag = 'smem constant byte address 0x4 - core index']
  #allocation1 [shape = 'u32[144,128]{1,0:T(1,128)}', space=vmem, size = 0x12000, scoped, tag = 'internal scratch']
  %s0 = inlined_call_operand.vmem [shape: f32[64,128], index: 0, kind: input, shape index: {}]
  %s1 = inlined_call_operand.vmem [shape: f32[128,640], index: 1, kind: input, shape index: {}]
  %s2 = inlined_call_operand.vmem [shape: f32[8,64], index: 2, kind: input, shape index: {}]
  %s3 = inlined_call_operand.vmem [shape: f32[8,128], index: 3, kind: input, shape index: {}]
  %s4 = inlined_call_operand.vmem [shape: f32[128,128], index: 4, kind: input, shape index: {}]
  %s5 = inlined_call_operand.vmem [shape: f32[1,128], index: 5, kind: input, shape index: {}]
  %s6 = inlined_call_operand.vmem [shape: f32[640,128], index: 6, kind: input, shape index: {}]
  %s7 = inlined_call_operand.vmem [shape: f32[1,128], index: 7, kind: input, shape index: {}]
  %s8 = inlined_call_operand.vmem [shape: f32[128,2], index: 8, kind: input, shape index: {}]
  %s9 = inlined_call_operand.vmem [shape: f32[128,2], index: 9, kind: input, shape index: {}]
  %s10 = inlined_call_operand.vmem [shape: f32[1,2], index: 10, kind: input, shape index: {}]
  %s11 = inlined_call_operand.vmem [shape: f32[128,256], index: 11, kind: input, shape index: {}]
  %s12 = inlined_call_operand.vmem [shape: f32[128,256], index: 12, kind: input, shape index: {}]
  %s13 = inlined_call_operand.vmem [shape: f32[1,256], index: 13, kind: input, shape index: {}]
  %s14 = inlined_call_operand.vmem [shape: f32[256,128], index: 14, kind: input, shape index: {}]
  %s15 = inlined_call_operand.vmem [shape: f32[1,128], index: 15, kind: input, shape index: {}]
  %s16 = inlined_call_operand.vmem [shape: f32[8,128], index: 16, kind: output, shape index: {}]
  %s17 = sld [smem:[#allocation0]]
  $region74: #{forward.1} parent=0
    _
  %s19 = ssub.s32 1, %s17
  %s20 = scalar_select 0, %s19, %s17
  // Predicated region
  $region2: #{forward.1} parent=0 // pred_check
    _
  $region3: #{forward.1} parent=0 // pred_check_branch
    %22 = sbr.rel (0) target = $region5
  $region4: #{forward.1} parent=0 // pred_region
    _
  $region5: #{forward.1} parent=0 // pred_fallthru
    _
  // Predicated region
  $region6: #{forward.1} parent=0 // pred_check
    _
  $region7: #{forward.1} parent=0 // pred_check_branch
    %24 = sbr.rel (0) target = $region9
  $region8: #{forward.1} parent=0 // pred_region
    _
  $region9: #{forward.1} parent=0 // pred_fallthru
    _
  // Predicated region
  $region10: #{forward.1} parent=0 // pred_check
    _
  $region11: #{forward.1} parent=0 // pred_check_branch
    %26 = sbr.rel (0) target = $region13
  $region12: #{forward.1} parent=0 // pred_region
    _
  $region13: #{forward.1} parent=0 // pred_fallthru
    _
  // Predicated region
  $region14: #{forward.1} parent=0 // pred_check
    _
  $region15: #{forward.1} parent=0 // pred_check_branch
    %28 = sbr.rel (0) target = $region17
  $region16: #{forward.1} parent=0 // pred_region
    _
  $region17: #{forward.1} parent=0 // pred_fallthru
    _
  // Predicated region
  $region18: #{forward.1} parent=0 // pred_check
    _
  $region19: #{forward.1} parent=0 // pred_check_branch
    %30 = sbr.rel (0) target = $region21
  $region20: #{forward.1} parent=0 // pred_region
    _
  $region21: #{forward.1} parent=0 // pred_fallthru
    _
  // Predicated region
  $region22: #{forward.1} parent=0 // pred_check
    _
  $region23: #{forward.1} parent=0 // pred_check_branch
    %32 = sbr.rel (0) target = $region25
  $region24: #{forward.1} parent=0 // pred_region
    _
  $region25: #{forward.1} parent=0 // pred_fallthru
    _
  // Predicated region
  $region26: #{forward.1} parent=0 // pred_check
    _
  $region27: #{forward.1} parent=0 // pred_check_branch
    %34 = sbr.rel (0) target = $region29
  $region28: #{forward.1} parent=0 // pred_region
    _
  $region29: #{forward.1} parent=0 // pred_fallthru
    _
  // Predicated region
  $region30: #{forward.1} parent=0 // pred_check
    _
  $region31: #{forward.1} parent=0 // pred_check_branch
    %36 = sbr.rel (0) target = $region33
  $region32: #{forward.1} parent=0 // pred_region
    _
  $region33: #{forward.1} parent=0 // pred_fallthru
    _
  // Predicated region
  $region34: #{forward.1} parent=0 // pred_check
    _
  $region35: #{forward.1} parent=0 // pred_check_branch
    %38 = sbr.rel (0) target = $region37
  $region36: #{forward.1} parent=0 // pred_region
    _
  $region37: #{forward.1} parent=0 // pred_fallthru
    _
  // Predicated region
  $region38: #{forward.1} parent=0 // pred_check
    _
  $region39: #{forward.1} parent=0 // pred_check_branch
    %40 = sbr.rel (0) target = $region41
  $region40: #{forward.1} parent=0 // pred_region
    _
  $region41: #{forward.1} parent=0 // pred_fallthru
    _
  // Predicated region
  $region42: #{forward.1} parent=0 // pred_check
    _
  $region43: #{forward.1} parent=0 // pred_check_branch
    %42 = sbr.rel (0) target = $region45
  $region44: #{forward.1} parent=0 // pred_region
    _
  $region45: #{forward.1} parent=0 // pred_fallthru
    _
  // Predicated region
  $region46: #{forward.1} parent=0 // pred_check
    _
  $region47: #{forward.1} parent=0 // pred_check_branch
    %44 = sbr.rel (0) target = $region49
  $region48: #{forward.1} parent=0 // pred_region
    _
  $region49: #{forward.1} parent=0 // pred_fallthru
    _
  // Predicated region
  $region50: #{forward.1} parent=0 // pred_check
    _
  $region51: #{forward.1} parent=0 // pred_check_branch
    %46 = sbr.rel (0) target = $region53
  $region52: #{forward.1} parent=0 // pred_region
    _
  $region53: #{forward.1} parent=0 // pred_fallthru
    _
  // Predicated region
  $region54: #{forward.1} parent=0 // pred_check
    _
  $region55: #{forward.1} parent=0 // pred_check_branch
    %48 = sbr.rel (0) target = $region57
  $region56: #{forward.1} parent=0 // pred_region
    _
  $region57: #{forward.1} parent=0 // pred_fallthru
    _
  // Predicated region
  $region58: #{forward.1} parent=0 // pred_check
    _
  $region59: #{forward.1} parent=0 // pred_check_branch
    %50 = sbr.rel (0) target = $region61
  $region60: #{forward.1} parent=0 // pred_region
    _
  $region61: #{forward.1} parent=0 // pred_fallthru
    _
  // Predicated region
  $region62: #{forward.1} parent=0 // pred_check
    _
  $region63: #{forward.1} parent=0 // pred_check_branch
    %52 = sbr.rel (0) target = $region65
  $region64: #{forward.1} parent=0 // pred_region
    _
  $region65: #{forward.1} parent=0 // pred_fallthru
    _
  %v53 = vld [vmem:[%s0] sm:$0xff]
  %v54 = vld [vmem:[%s0 + $0x8] sm:$0xff]
  %v55 = vld [vmem:[%s0 + $0x10] sm:$0xff]
  %v56 = vld [vmem:[%s0 + $0x18] sm:$0xff]
  %v57 = vld [vmem:[%s0 + $0x20] sm:$0xff]
  %v58 = vld [vmem:[%s0 + $0x28] sm:$0xff]
  %v59 = vld [vmem:[%s0 + $0x30] sm:$0xff]
  %v60 = vld [vmem:[%s0 + $0x38] sm:$0xff]
  %v61 = vld [vmem:[%s4] sm:$0xff]
  %v62 = vld [vmem:[%s4 + $0x8] sm:$0xff]
  %v63 = vld [vmem:[%s4 + $0x10] sm:$0xff]
  %v64 = vld [vmem:[%s4 + $0x18] sm:$0xff]
  %v65 = vld [vmem:[%s4 + $0x20] sm:$0xff]
  %v66 = vld [vmem:[%s4 + $0x28] sm:$0xff]
  %v67 = vld [vmem:[%s4 + $0x30] sm:$0xff]
  %v68 = vld [vmem:[%s4 + $0x38] sm:$0xff]
  %v69 = vld [vmem:[%s4 + $0x40] sm:$0xff]
  %v70 = vld [vmem:[%s4 + $0x48] sm:$0xff]
  %v71 = vld [vmem:[%s4 + $0x50] sm:$0xff]
  %v72 = vld [vmem:[%s4 + $0x58] sm:$0xff]
  %v73 = vld [vmem:[%s4 + $0x60] sm:$0xff]
  %v74 = vld [vmem:[%s4 + $0x68] sm:$0xff]
  %v75 = vld [vmem:[%s4 + $0x70] sm:$0xff]
  %v76 = vld [vmem:[%s4 + $0x78] sm:$0xff]
  %v77 = vld [vmem:[%s5] sm:$0x1]
  %v79 = vlaneseq
  %v80 = vshrl.u32 %v79, 7
  %v81 = vsub.s32 0, %v80
  %v82 = vrot.slane %v77, %v81
  %84 = vmatprep.subr.mxu0 0.0
  %85 = vmatpush1.msra.mxu0 %v61
  %86 = vmatprep.subr.mxu0 0.0
  %87 = vmatpush1.msra.mxu0 %v62
  %88 = vmatprep.subr.mxu0 0.0
  %89 = vmatpush1.msra.mxu0 %v63
  %90 = vmatprep.subr.mxu0 0.0
  %91 = vmatpush1.msra.mxu0 %v64
  %92 = vmatprep.subr.mxu0 0.0
  %93 = vmatpush1.msra.mxu0 %v65
  %94 = vmatprep.subr.mxu0 0.0
  %95 = vmatpush1.msra.mxu0 %v66
  %96 = vmatprep.subr.mxu0 0.0
  %97 = vmatpush1.msra.mxu0 %v67
  %98 = vmatprep.subr.mxu0 0.0
  %99 = vmatpush1.msra.mxu0 %v68
  %100 = vmatprep.subr.mxu0 0.0
  %101 = vmatpush1.msra.mxu0 %v69
  %102 = vmatprep.subr.mxu0 0.0
  %103 = vmatpush1.msra.mxu0 %v70
  %104 = vmatprep.subr.mxu0 0.0
  %105 = vmatpush1.msra.mxu0 %v71
  %106 = vmatprep.subr.mxu0 0.0
  %107 = vmatpush1.msra.mxu0 %v72
  %108 = vmatprep.subr.mxu0 0.0
  %109 = vmatpush1.msra.mxu0 %v73
  %110 = vmatprep.subr.mxu0 0.0
  %111 = vmatpush1.msra.mxu0 %v74
  %112 = vmatprep.subr.mxu0 0.0
  %113 = vmatpush1.msra.mxu0 %v75
  %114 = vmatprep.subr.mxu0 0.0
  %115 = vmatpush1.msra.mxu0 %v76
  %116 = vmatprep.subr.mxu0 0.0
  %117 = vmatpush1.msra.mxu0 0.0
  %118 = vmatprep.subr.mxu0 0.0
  %119 = vmatpush1.msra.mxu0 0.0
  %120 = vmatprep.subr.mxu0 0.0
  %121 = vmatpush1.msra.mxu0 0.0
  %122 = vmatprep.subr.mxu0 0.0
  %123 = vmatpush1.msra.mxu0 0.0
  %124 = vmatprep.subr.mxu0 0.0
  %125 = vmatpush1.msra.mxu0 0.0
  %126 = vmatprep.subr.mxu0 0.0
  %127 = vmatpush1.msra.mxu0 0.0
  %128 = vmatprep.subr.mxu0 0.0
  %129 = vmatpush1.msra.mxu0 0.0
  %130 = vmatprep.subr.mxu0 0.0
  %131 = vmatpush1.msra.mxu0 0.0
  %132 = vmatprep.subr.mxu0 0.0
  %133 = vmatpush1.msra.mxu0 0.0
  %134 = vmatprep.subr.mxu0 0.0
  %135 = vmatpush1.msra.mxu0 0.0
  %136 = vmatprep.subr.mxu0 0.0
  %137 = vmatpush1.msra.mxu0 0.0
  %138 = vmatprep.subr.mxu0 0.0
  %139 = vmatpush1.msra.mxu0 0.0
  %140 = vmatprep.subr.mxu0 0.0
  %141 = vmatpush1.msra.mxu0 0.0
  %142 = vmatprep.subr.mxu0 0.0
  %143 = vmatpush1.msra.mxu0 0.0
  %144 = vmatprep.subr.mxu0 0.0
  %145 = vmatpush1.msra.mxu0 0.0
  %146 = vmatprep.subr.mxu0 0.0
  %147 = vmatpush1.msra.mxu0 0.0
  %148 = vmatprep.mubr.f32.mxu0 0.0
  %149 = vmatmul.mubr.f32.gmra.mrb[0].mxu0 %v53
  %v150 = vpop.f32.mrb[0].mxu0
  %v151 = vadd.f32 %v82, %v150
  %v152 = vpop.f32.mrb[0].mxu0
  %153 = vmatprep.mubr.f32.mxu0 0.0
  %154 = vmatmul.mubr.f32.gmra.mrb[0].mxu0 %v54
  %v155 = vpop.f32.mrb[0].mxu0
  %v156 = vadd.f32 %v82, %v155
  %v157 = vpop.f32.mrb[0].mxu0
  %158 = vmatprep.mubr.f32.mxu0 0.0
  %159 = vmatmul.mubr.f32.gmra.mrb[0].mxu0 %v55
  %v160 = vpop.f32.mrb[0].mxu0
  %v161 = vadd.f32 %v82, %v160
  %v162 = vpop.f32.mrb[0].mxu0
  %163 = vmatprep.mubr.f32.mxu0 0.0
  %164 = vmatmul.mubr.f32.gmra.mrb[0].mxu0 %v56
  %v165 = vpop.f32.mrb[0].mxu0
  %v166 = vadd.f32 %v82, %v165
  %v167 = vpop.f32.mrb[0].mxu0
  %168 = vmatprep.mubr.f32.mxu0 0.0
  %169 = vmatmul.mubr.f32.gmra.mrb[0].mxu0 %v57
  %v170 = vpop.f32.mrb[0].mxu0
  %v171 = vadd.f32 %v82, %v170
  %v172 = vpop.f32.mrb[0].mxu0
  %173 = vmatprep.mubr.f32.mxu0 0.0
  %174 = vmatmul.mubr.f32.gmra.mrb[0].mxu0 %v58
  %v175 = vpop.f32.mrb[0].mxu0
  %v176 = vadd.f32 %v82, %v175
  %v177 = vpop.f32.mrb[0].mxu0
  %178 = vmatprep.mubr.f32.mxu0 0.0
  %179 = vmatmul.mubr.f32.gmra.mrb[0].mxu0 %v59
  %v180 = vpop.f32.mrb[0].mxu0
  %v181 = vadd.f32 %v82, %v180
  %v182 = vpop.f32.mrb[0].mxu0
  %183 = vmatprep.mubr.f32.mxu0 0.0
  %184 = vmatmul.mubr.f32.gmra.mrb[0].mxu0 %v60
  %v185 = vpop.f32.mrb[0].mxu0
  %v186 = vadd.f32 %v82, %v185
  %v187 = vpop.f32.mrb[0].mxu0
  %188 = vdwg.mxu0
  %v189 = vmax.f32 %v151, 0.0
  %v190 = vmax.f32 %v156, 0.0
  %v191 = vmax.f32 %v161, 0.0
  %v192 = vmax.f32 %v166, 0.0
  %v193 = vmax.f32 %v171, 0.0
  %v194 = vmax.f32 %v176, 0.0
  %v195 = vmax.f32 %v181, 0.0
  %v196 = vmax.f32 %v186, 0.0
  %v197 = vld [vmem:[%s2] sm:$0xff]
  %vm198 = vcmask 523264
  %v200 = vsel %vm198, %v197, 0
  %202 = vmatprep.subr.mxu0 0.0
  %203 = vmatpush1.msra.mxu0 %v189
  %204 = vmatprep.subr.mxu0 0.0
  %205 = vmatpush1.msra.mxu0 %v190
  %206 = vmatprep.subr.mxu0 0.0
  %207 = vmatpush1.msra.mxu0 %v191
  %208 = vmatprep.subr.mxu0 0.0
  %209 = vmatpush1.msra.mxu0 %v192
  %210 = vmatprep.subr.mxu0 0.0
  %211 = vmatpush1.msra.mxu0 %v193
  %212 = vmatprep.subr.mxu0 0.0
  %213 = vmatpush1.msra.mxu0 %v194
  %214 = vmatprep.subr.mxu0 0.0
  %215 = vmatpush1.msra.mxu0 %v195
  %216 = vmatprep.subr.mxu0 0.0
  %217 = vmatpush1.msra.mxu0 %v196
  %218 = vmatprep.subr.mxu0 0.0
  %219 = vmatpush1.msra.mxu0 0.0
  %220 = vmatprep.subr.mxu0 0.0
  %221 = vmatpush1.msra.mxu0 0.0
  %222 = vmatprep.subr.mxu0 0.0
  %223 = vmatpush1.msra.mxu0 0.0
  %224 = vmatprep.subr.mxu0 0.0
  %225 = vmatpush1.msra.mxu0 0.0
  %226 = vmatprep.subr.mxu0 0.0
  %227 = vmatpush1.msra.mxu0 0.0
  %228 = vmatprep.subr.mxu0 0.0
  %229 = vmatpush1.msra.mxu0 0.0
  %230 = vmatprep.subr.mxu0 0.0
  %231 = vmatpush1.msra.mxu0 0.0
  %232 = vmatprep.subr.mxu0 0.0
  %233 = vmatpush1.msra.mxu0 0.0
  %234 = vmatprep.subr.mxu0 0.0
  %235 = vmatpush1.msra.mxu0 0.0
  %236 = vmatprep.subr.mxu0 0.0
  %237 = vmatpush1.msra.mxu0 0.0
  %238 = vmatprep.subr.mxu0 0.0
  %239 = vmatpush1.msra.mxu0 0.0
  %240 = vmatprep.subr.mxu0 0.0
  %241 = vmatpush1.msra.mxu0 0.0
  %242 = vmatprep.subr.mxu0 0.0
  %243 = vmatpush1.msra.mxu0 0.0
  %244 = vmatprep.subr.mxu0 0.0
  %245 = vmatpush1.msra.mxu0 0.0
  %246 = vmatprep.subr.mxu0 0.0
  %247 = vmatpush1.msra.mxu0 0.0
  %248 = vmatprep.subr.mxu0 0.0
  %249 = vmatpush1.msra.mxu0 0.0
  %250 = vmatprep.subr.mxu0 0.0
  %251 = vmatpush1.msra.mxu0 0.0
  %252 = vmatprep.subr.mxu0 0.0
  %253 = vmatpush1.msra.mxu0 0.0
  %254 = vmatprep.subr.mxu0 0.0
  %255 = vmatpush1.msra.mxu0 0.0
  %256 = vmatprep.subr.mxu0 0.0
  %257 = vmatpush1.msra.mxu0 0.0
  %258 = vmatprep.subr.mxu0 0.0
  %259 = vmatpush1.msra.mxu0 0.0
  %260 = vmatprep.subr.mxu0 0.0
  %261 = vmatpush1.msra.mxu0 0.0
  %262 = vmatprep.subr.mxu0 0.0
  %263 = vmatpush1.msra.mxu0 0.0
  %264 = vmatprep.subr.mxu0 0.0
  %265 = vmatpush1.msra.mxu0 0.0
  %266 = vmatprep.mubr.f32.mxu0 0.0
  %267 = vmatmul.mubr.f32.gmra.mrb[0].mxu0 %v200
  %v268 = vpop.f32.mrb[0].mxu0
  %v269 = vadd.f32 0.0, %v268
  %v270 = vpop.f32.mrb[0].mxu0
  %271 = vdwg.mxu0
  %v272 = vld [vmem:[%s1] sm:$0xff]
  %v273 = vld [vmem:[%s1 + $0x8] sm:$0xff]
  %v274 = vld [vmem:[%s1 + $0x10] sm:$0xff]
  %v275 = vld [vmem:[%s1 + $0x18] sm:$0xff]
  %v276 = vld [vmem:[%s1 + $0x20] sm:$0xff]
  %v277 = vld [vmem:[%s1 + $0x28] sm:$0xff]
  %v278 = vld [vmem:[%s1 + $0x30] sm:$0xff]
  %v279 = vld [vmem:[%s1 + $0x38] sm:$0xff]
  %v280 = vld [vmem:[%s1 + $0x40] sm:$0xff]
  %v281 = vld [vmem:[%s1 + $0x48] sm:$0xff]
  %v282 = vld [vmem:[%s1 + $0x50] sm:$0xff]
  %v283 = vld [vmem:[%s1 + $0x58] sm:$0xff]
  %v284 = vld [vmem:[%s1 + $0x60] sm:$0xff]
  %v285 = vld [vmem:[%s1 + $0x68] sm:$0xff]
  %v286 = vld [vmem:[%s1 + $0x70] sm:$0xff]
  %v287 = vld [vmem:[%s1 + $0x78] sm:$0xff]
  %v288 = vld [vmem:[%s1 + $0x80] sm:$0xff]
  %v289 = vld [vmem:[%s1 + $0x88] sm:$0xff]
  %v290 = vld [vmem:[%s1 + $0x90] sm:$0xff]
  %v291 = vld [vmem:[%s1 + $0x98] sm:$0xff]
  %v292 = vld [vmem:[%s1 + $0xa0] sm:$0xff]
  %v293 = vld [vmem:[%s1 + $0xa8] sm:$0xff]
  %v294 = vld [vmem:[%s1 + $0xb0] sm:$0xff]
  %v295 = vld [vmem:[%s1 + $0xb8] sm:$0xff]
  %v296 = vld [vmem:[%s1 + $0xc0] sm:$0xff]
  %v297 = vld [vmem:[%s1 + $0xc8] sm:$0xff]
  %v298 = vld [vmem:[%s1 + $0xd0] sm:$0xff]
  %v299 = vld [vmem:[%s1 + $0xd8] sm:$0xff]
  %v300 = vld [vmem:[%s1 + $0xe0] sm:$0xff]
  %v301 = vld [vmem:[%s1 + $0xe8] sm:$0xff]
  %v302 = vld [vmem:[%s1 + $0xf0] sm:$0xff]
  %v303 = vld [vmem:[%s1 + $0xf8] sm:$0xff]
  %v304 = vld [vmem:[%s1 + $0x100] sm:$0xff]
  %v305 = vld [vmem:[%s1 + $0x108] sm:$0xff]
  %v306 = vld [vmem:[%s1 + $0x110] sm:$0xff]
  %v307 = vld [vmem:[%s1 + $0x118] sm:$0xff]
  %v308 = vld [vmem:[%s1 + $0x120] sm:$0xff]
  %v309 = vld [vmem:[%s1 + $0x128] sm:$0xff]
  %v310 = vld [vmem:[%s1 + $0x130] sm:$0xff]
  %v311 = vld [vmem:[%s1 + $0x138] sm:$0xff]
  %v312 = vld [vmem:[%s1 + $0x140] sm:$0xff]
  %v313 = vld [vmem:[%s1 + $0x148] sm:$0xff]
  %v314 = vld [vmem:[%s1 + $0x150] sm:$0xff]
  %v315 = vld [vmem:[%s1 + $0x158] sm:$0xff]
  %v316 = vld [vmem:[%s1 + $0x160] sm:$0xff]
  %v317 = vld [vmem:[%s1 + $0x168] sm:$0xff]
  %v318 = vld [vmem:[%s1 + $0x170] sm:$0xff]
  %v319 = vld [vmem:[%s1 + $0x178] sm:$0xff]
  %v320 = vld [vmem:[%s1 + $0x180] sm:$0xff]
  %v321 = vld [vmem:[%s1 + $0x188] sm:$0xff]
  %v322 = vld [vmem:[%s1 + $0x190] sm:$0xff]
  %v323 = vld [vmem:[%s1 + $0x198] sm:$0xff]
  %v324 = vld [vmem:[%s1 + $0x1a0] sm:$0xff]
  %v325 = vld [vmem:[%s1 + $0x1a8] sm:$0xff]
  %v326 = vld [vmem:[%s1 + $0x1b0] sm:$0xff]
  %v327 = vld [vmem:[%s1 + $0x1b8] sm:$0xff]
  %v328 = vld [vmem:[%s1 + $0x1c0] sm:$0xff]
  %v329 = vld [vmem:[%s1 + $0x1c8] sm:$0xff]
  %v330 = vld [vmem:[%s1 + $0x1d0] sm:$0xff]
  %v331 = vld [vmem:[%s1 + $0x1d8] sm:$0xff]
  %v332 = vld [vmem:[%s1 + $0x1e0] sm:$0xff]
  %v333 = vld [vmem:[%s1 + $0x1e8] sm:$0xff]
  %v334 = vld [vmem:[%s1 + $0x1f0] sm:$0xff]
  %v335 = vld [vmem:[%s1 + $0x1f8] sm:$0xff]
  %v336 = vld [vmem:[%s1 + $0x200] sm:$0xff]
  %v337 = vld [vmem:[%s1 + $0x208] sm:$0xff]
  %v338 = vld [vmem:[%s1 + $0x210] sm:$0xff]
  %v339 = vld [vmem:[%s1 + $0x218] sm:$0xff]
  %v340 = vld [vmem:[%s1 + $0x220] sm:$0xff]
  %v341 = vld [vmem:[%s1 + $0x228] sm:$0xff]
  %v342 = vld [vmem:[%s1 + $0x230] sm:$0xff]
  %v343 = vld [vmem:[%s1 + $0x238] sm:$0xff]
  %v344 = vld [vmem:[%s1 + $0x240] sm:$0xff]
  %v345 = vld [vmem:[%s1 + $0x248] sm:$0xff]
  %v346 = vld [vmem:[%s1 + $0x250] sm:$0xff]
  %v347 = vld [vmem:[%s1 + $0x258] sm:$0xff]
  %v348 = vld [vmem:[%s1 + $0x260] sm:$0xff]
  %v349 = vld [vmem:[%s1 + $0x268] sm:$0xff]
  %v350 = vld [vmem:[%s1 + $0x270] sm:$0xff]
  %v351 = vld [vmem:[%s1 + $0x278] sm:$0xff]
  %v352 = vld [vmem:[%s6] sm:$0xff]
  %v353 = vld [vmem:[%s6 + $0x8] sm:$0xff]
  %v354 = vld [vmem:[%s6 + $0x10] sm:$0xff]
  %v355 = vld [vmem:[%s6 + $0x18] sm:$0xff]
  %v356 = vld [vmem:[%s6 + $0x20] sm:$0xff]
  %v357 = vld [vmem:[%s6 + $0x28] sm:$0xff]
  %v358 = vld [vmem:[%s6 + $0x30] sm:$0xff]
  %v359 = vld [vmem:[%s6 + $0x38] sm:$0xff]
  %v360 = vld [vmem:[%s6 + $0x40] sm:$0xff]
  %v361 = vld [vmem:[%s6 + $0x48] sm:$0xff]
  %v362 = vld [vmem:[%s6 + $0x50] sm:$0xff]
  %v363 = vld [vmem:[%s6 + $0x58] sm:$0xff]
  %v364 = vld [vmem:[%s6 + $0x60] sm:$0xff]
  %v365 = vld [vmem:[%s6 + $0x68] sm:$0xff]
  %v366 = vld [vmem:[%s6 + $0x70] sm:$0xff]
  %v367 = vld [vmem:[%s6 + $0x78] sm:$0xff]
  %v368 = vld [vmem:[%s6 + $0x80] sm:$0xff]
  %v369 = vld [vmem:[%s6 + $0x88] sm:$0xff]
  %v370 = vld [vmem:[%s6 + $0x90] sm:$0xff]
  %v371 = vld [vmem:[%s6 + $0x98] sm:$0xff]
  %v372 = vld [vmem:[%s6 + $0xa0] sm:$0xff]
  %v373 = vld [vmem:[%s6 + $0xa8] sm:$0xff]
  %v374 = vld [vmem:[%s6 + $0xb0] sm:$0xff]
  %v375 = vld [vmem:[%s6 + $0xb8] sm:$0xff]
  %v376 = vld [vmem:[%s6 + $0xc0] sm:$0xff]
  %v377 = vld [vmem:[%s6 + $0xc8] sm:$0xff]
  %v378 = vld [vmem:[%s6 + $0xd0] sm:$0xff]
  %v379 = vld [vmem:[%s6 + $0xd8] sm:$0xff]
  %v380 = vld [vmem:[%s6 + $0xe0] sm:$0xff]
  %v381 = vld [vmem:[%s6 + $0xe8] sm:$0xff]
  %v382 = vld [vmem:[%s6 + $0xf0] sm:$0xff]
  %v383 = vld [vmem:[%s6 + $0xf8] sm:$0xff]
  %v384 = vld [vmem:[%s6 + $0x100] sm:$0xff]
  %v385 = vld [vmem:[%s6 + $0x108] sm:$0xff]
  %v386 = vld [vmem:[%s6 + $0x110] sm:$0xff]
  %v387 = vld [vmem:[%s6 + $0x118] sm:$0xff]
  %v388 = vld [vmem:[%s6 + $0x120] sm:$0xff]
  %v389 = vld [vmem:[%s6 + $0x128] sm:$0xff]
  %v390 = vld [vmem:[%s6 + $0x130] sm:$0xff]
  %v391 = vld [vmem:[%s6 + $0x138] sm:$0xff]
  %v392 = vld [vmem:[%s6 + $0x140] sm:$0xff]
  %v393 = vld [vmem:[%s6 + $0x148] sm:$0xff]
  %v394 = vld [vmem:[%s6 + $0x150] sm:$0xff]
  %v395 = vld [vmem:[%s6 + $0x158] sm:$0xff]
  %v396 = vld [vmem:[%s6 + $0x160] sm:$0xff]
  %v397 = vld [vmem:[%s6 + $0x168] sm:$0xff]
  %v398 = vld [vmem:[%s6 + $0x170] sm:$0xff]
  %v399 = vld [vmem:[%s6 + $0x178] sm:$0xff]
  %v400 = vld [vmem:[%s6 + $0x180] sm:$0xff]
  %v401 = vld [vmem:[%s6 + $0x188] sm:$0xff]
  %v402 = vld [vmem:[%s6 + $0x190] sm:$0xff]
  %v403 = vld [vmem:[%s6 + $0x198] sm:$0xff]
  %v404 = vld [vmem:[%s6 + $0x1a0] sm:$0xff]
  %v405 = vld [vmem:[%s6 + $0x1a8] sm:$0xff]
  %v406 = vld [vmem:[%s6 + $0x1b0] sm:$0xff]
  %v407 = vld [vmem:[%s6 + $0x1b8] sm:$0xff]
  %v408 = vld [vmem:[%s6 + $0x1c0] sm:$0xff]
  %v409 = vld [vmem:[%s6 + $0x1c8] sm:$0xff]
  %v410 = vld [vmem:[%s6 + $0x1d0] sm:$0xff]
  %v411 = vld [vmem:[%s6 + $0x1d8] sm:$0xff]
  %v412 = vld [vmem:[%s6 + $0x1e0] sm:$0xff]
  %v413 = vld [vmem:[%s6 + $0x1e8] sm:$0xff]
  %v414 = vld [vmem:[%s6 + $0x1f0] sm:$0xff]
  %v415 = vld [vmem:[%s6 + $0x1f8] sm:$0xff]
  %v416 = vld [vmem:[%s6 + $0x200] sm:$0xff]
  %v417 = vld [vmem:[%s6 + $0x208] sm:$0xff]
  %v418 = vld [vmem:[%s6 + $0x210] sm:$0xff]
  %v419 = vld [vmem:[%s6 + $0x218] sm:$0xff]
  %v420 = vld [vmem:[%s6 + $0x220] sm:$0xff]
  %v421 = vld [vmem:[%s6 + $0x228] sm:$0xff]
  %v422 = vld [vmem:[%s6 + $0x230] sm:$0xff]
  %v423 = vld [vmem:[%s6 + $0x238] sm:$0xff]
  %v424 = vld [vmem:[%s6 + $0x240] sm:$0xff]
  %v425 = vld [vmem:[%s6 + $0x248] sm:$0xff]
  %v426 = vld [vmem:[%s6 + $0x250] sm:$0xff]
  %v427 = vld [vmem:[%s6 + $0x258] sm:$0xff]
  %v428 = vld [vmem:[%s6 + $0x260] sm:$0xff]
  %v429 = vld [vmem:[%s6 + $0x268] sm:$0xff]
  %v430 = vld [vmem:[%s6 + $0x270] sm:$0xff]
  %v431 = vld [vmem:[%s6 + $0x278] sm:$0xff]
  %v432 = vld [vmem:[%s7] sm:$0x1]
  %v434 = vlaneseq
  %v435 = vshrl.u32 %v434, 7
  %v436 = vsub.s32 0, %v435
  %v437 = vrot.slane %v432, %v436
  %439 = vmatprep.subr.mxu0 0.0
  %440 = vmatpush1.msra.mxu0 %v352
  %441 = vmatprep.subr.mxu0 0.0
  %442 = vmatpush1.msra.mxu0 %v353
  %443 = vmatprep.subr.mxu0 0.0
  %444 = vmatpush1.msra.mxu0 %v354
  %445 = vmatprep.subr.mxu0 0.0
  %446 = vmatpush1.msra.mxu0 %v355
  %447 = vmatprep.subr.mxu0 0.0
  %448 = vmatpush1.msra.mxu0 %v356
  %449 = vmatprep.subr.mxu0 0.0
  %450 = vmatpush1.msra.mxu0 %v357
  %451 = vmatprep.subr.mxu0 0.0
  %452 = vmatpush1.msra.mxu0 %v358
  %453 = vmatprep.subr.mxu0 0.0
  %454 = vmatpush1.msra.mxu0 %v359
  %455 = vmatprep.subr.mxu0 0.0
  %456 = vmatpush1.msra.mxu0 %v360
  %457 = vmatprep.subr.mxu0 0.0
  %458 = vmatpush1.msra.mxu0 %v361
  %459 = vmatprep.subr.mxu0 0.0
  %460 = vmatpush1.msra.mxu0 %v362
  %461 = vmatprep.subr.mxu0 0.0
  %462 = vmatpush1.msra.mxu0 %v363
  %463 = vmatprep.subr.mxu0 0.0
  %464 = vmatpush1.msra.mxu0 %v364
  %465 = vmatprep.subr.mxu0 0.0
  %466 = vmatpush1.msra.mxu0 %v365
  %467 = vmatprep.subr.mxu0 0.0
  %468 = vmatpush1.msra.mxu0 %v366
  %469 = vmatprep.subr.mxu0 0.0
  %470 = vmatpush1.msra.mxu0 %v367
  %471 = vmatprep.subr.mxu0 0.0
  %472 = vmatpush1.msra.mxu0 %v368
  %473 = vmatprep.subr.mxu0 0.0
  %474 = vmatpush1.msra.mxu0 %v369
  %475 = vmatprep.subr.mxu0 0.0
  %476 = vmatpush1.msra.mxu0 %v370
  %477 = vmatprep.subr.mxu0 0.0
  %478 = vmatpush1.msra.mxu0 %v371
  %479 = vmatprep.subr.mxu0 0.0
  %480 = vmatpush1.msra.mxu0 %v372
  %481 = vmatprep.subr.mxu0 0.0
  %482 = vmatpush1.msra.mxu0 %v373
  %483 = vmatprep.subr.mxu0 0.0
  %484 = vmatpush1.msra.mxu0 %v374
  %485 = vmatprep.subr.mxu0 0.0
  %486 = vmatpush1.msra.mxu0 %v375
  %487 = vmatprep.subr.mxu0 0.0
  %488 = vmatpush1.msra.mxu0 %v376
  %489 = vmatprep.subr.mxu0 0.0
  %490 = vmatpush1.msra.mxu0 %v377
  %491 = vmatprep.subr.mxu0 0.0
  %492 = vmatpush1.msra.mxu0 %v378
  %493 = vmatprep.subr.mxu0 0.0
  %494 = vmatpush1.msra.mxu0 %v379
  %495 = vmatprep.subr.mxu0 0.0
  %496 = vmatpush1.msra.mxu0 %v380
  %497 = vmatprep.subr.mxu0 0.0
  %498 = vmatpush1.msra.mxu0 %v381
  %499 = vmatprep.subr.mxu0 0.0
  %500 = vmatpush1.msra.mxu0 %v382
  %501 = vmatprep.subr.mxu0 0.0
  %502 = vmatpush1.msra.mxu0 %v383
  %503 = vmatprep.mubr.f32.mxu0 %v273
  %504 = vmatmul.mubr.f32.gmra.mrb[0].mxu0 %v272
  %v505 = vpop.f32.mrb[0].mxu0
  %v506 = vadd.f32 %v437, %v505
  %v507 = vpop.f32.mrb[0].mxu0
  %508 = vmatprep.mubr.f32.mxu0 %v278
  %509 = vmatmul.mubr.f32.gmra.mrb[0].mxu0 %v277
  %v510 = vpop.f32.mrb[0].mxu0
  %v511 = vadd.f32 %v437, %v510
  %v512 = vpop.f32.mrb[0].mxu0
  %513 = vmatprep.mubr.f32.mxu0 %v283
  %514 = vmatmul.mubr.f32.gmra.mrb[0].mxu0 %v282
  %v515 = vpop.f32.mrb[0].mxu0
  %v516 = vadd.f32 %v437, %v515
  %v517 = vpop.f32.mrb[0].mxu0
  %518 = vmatprep.mubr.f32.mxu0 %v288
  %519 = vmatmul.mubr.f32.gmra.mrb[0].mxu0 %v287
  %v520 = vpop.f32.mrb[0].mxu0
  %v521 = vadd.f32 %v437, %v520
  %v522 = vpop.f32.mrb[0].mxu0
  %523 = vmatprep.mubr.f32.mxu0 %v293
  %524 = vmatmul.mubr.f32.gmra.mrb[0].mxu0 %v292
  %v525 = vpop.f32.mrb[0].mxu0
  %v526 = vadd.f32 %v437, %v525
  %v527 = vpop.f32.mrb[0].mxu0
  %528 = vmatprep.mubr.f32.mxu0 %v298
  %529 = vmatmul.mubr.f32.gmra.mrb[0].mxu0 %v297
  %v530 = vpop.f32.mrb[0].mxu0
  %v531 = vadd.f32 %v437, %v530
  %v532 = vpop.f32.mrb[0].mxu0
  %533 = vmatprep.mubr.f32.mxu0 %v303
  %534 = vmatmul.mubr.f32.gmra.mrb[0].mxu0 %v302
  %v535 = vpop.f32.mrb[0].mxu0
  %v536 = vadd.f32 %v437, %v535
  %v537 = vpop.f32.mrb[0].mxu0
  %538 = vmatprep.mubr.f32.mxu0 %v308
  %539 = vmatmul.mubr.f32.gmra.mrb[0].mxu0 %v307
  %v540 = vpop.f32.mrb[0].mxu0
  %v541 = vadd.f32 %v437, %v540
  %v542 = vpop.f32.mrb[0].mxu0
  %543 = vmatprep.mubr.f32.mxu0 %v313
  %544 = vmatmul.mubr.f32.gmra.mrb[0].mxu0 %v312
  %v545 = vpop.f32.mrb[0].mxu0
  %v546 = vadd.f32 %v437, %v545
  %v547 = vpop.f32.mrb[0].mxu0
  %548 = vmatprep.mubr.f32.mxu0 %v318
  %549 = vmatmul.mubr.f32.gmra.mrb[0].mxu0 %v317
  %v550 = vpop.f32.mrb[0].mxu0
  %v551 = vadd.f32 %v437, %v550
  %v552 = vpop.f32.mrb[0].mxu0
  %553 = vmatprep.mubr.f32.mxu0 %v323
  %554 = vmatmul.mubr.f32.gmra.mrb[0].mxu0 %v322
  %v555 = vpop.f32.mrb[0].mxu0
  %v556 = vadd.f32 %v437, %v555
  %v557 = vpop.f32.mrb[0].mxu0
  %558 = vmatprep.mubr.f32.mxu0 %v328
  %559 = vmatmul.mubr.f32.gmra.mrb[0].mxu0 %v327
  %v560 = vpop.f32.mrb[0].mxu0
  %v561 = vadd.f32 %v437, %v560
  %v562 = vpop.f32.mrb[0].mxu0
  %563 = vmatprep.mubr.f32.mxu0 %v333
  %564 = vmatmul.mubr.f32.gmra.mrb[0].mxu0 %v332
  %v565 = vpop.f32.mrb[0].mxu0
  %v566 = vadd.f32 %v437, %v565
  %v567 = vpop.f32.mrb[0].mxu0
  %568 = vmatprep.mubr.f32.mxu0 %v338
  %569 = vmatmul.mubr.f32.gmra.mrb[0].mxu0 %v337
  %v570 = vpop.f32.mrb[0].mxu0
  %v571 = vadd.f32 %v437, %v570
  %v572 = vpop.f32.mrb[0].mxu0
  %573 = vmatprep.mubr.f32.mxu0 %v343
  %574 = vmatmul.mubr.f32.gmra.mrb[0].mxu0 %v342
  %v575 = vpop.f32.mrb[0].mxu0
  %v576 = vadd.f32 %v437, %v575
  %v577 = vpop.f32.mrb[0].mxu0
  %578 = vmatprep.mubr.f32.mxu0 %v348
  %579 = vmatmul.mubr.f32.gmra.mrb[0].mxu0 %v347
  %v580 = vpop.f32.mrb[0].mxu0
  %v581 = vadd.f32 %v437, %v580
  %v582 = vpop.f32.mrb[0].mxu0
  %583 = vdwg.mxu0
  %584 = vmatprep.subr.mxu0 0.0
  %585 = vmatpush1.msra.mxu0 %v384
  %586 = vmatprep.subr.mxu0 0.0
  %587 = vmatpush1.msra.mxu0 %v385
  %588 = vmatprep.subr.mxu0 0.0
  %589 = vmatpush1.msra.mxu0 %v386
  %590 = vmatprep.subr.mxu0 0.0
  %591 = vmatpush1.msra.mxu0 %v387
  %592 = vmatprep.subr.mxu0 0.0
  %593 = vmatpush1.msra.mxu0 %v388
  %594 = vmatprep.subr.mxu0 0.0
  %595 = vmatpush1.msra.mxu0 %v389
  %596 = vmatprep.subr.mxu0 0.0
  %597 = vmatpush1.msra.mxu0 %v390
  %598 = vmatprep.subr.mxu0 0.0
  %599 = vmatpush1.msra.mxu0 %v391
  %600 = vmatprep.subr.mxu0 0.0
  %601 = vmatpush1.msra.mxu0 %v392
  %602 = vmatprep.subr.mxu0 0.0
  %603 = vmatpush1.msra.mxu0 %v393
  %604 = vmatprep.subr.mxu0 0.0
  %605 = vmatpush1.msra.mxu0 %v394
  %606 = vmatprep.subr.mxu0 0.0
  %607 = vmatpush1.msra.mxu0 %v395
  %608 = vmatprep.subr.mxu0 0.0
  %609 = vmatpush1.msra.mxu0 %v396
  %610 = vmatprep.subr.mxu0 0.0
  %611 = vmatpush1.msra.mxu0 %v397
  %612 = vmatprep.subr.mxu0 0.0
  %613 = vmatpush1.msra.mxu0 %v398
  %614 = vmatprep.subr.mxu0 0.0
  %615 = vmatpush1.msra.mxu0 %v399
  %616 = vmatprep.subr.mxu0 0.0
  %617 = vmatpush1.msra.mxu0 %v400
  %618 = vmatprep.subr.mxu0 0.0
  %619 = vmatpush1.msra.mxu0 %v401
  %620 = vmatprep.subr.mxu0 0.0
  %621 = vmatpush1.msra.mxu0 %v402
  %622 = vmatprep.subr.mxu0 0.0
  %623 = vmatpush1.msra.mxu0 %v403
  %624 = vmatprep.subr.mxu0 0.0
  %625 = vmatpush1.msra.mxu0 %v404
  %626 = vmatprep.subr.mxu0 0.0
  %627 = vmatpush1.msra.mxu0 %v405
  %628 = vmatprep.subr.mxu0 0.0
  %629 = vmatpush1.msra.mxu0 %v406
  %630 = vmatprep.subr.mxu0 0.0
  %631 = vmatpush1.msra.mxu0 %v407
  %632 = vmatprep.subr.mxu0 0.0
  %633 = vmatpush1.msra.mxu0 %v408
  %634 = vmatprep.subr.mxu0 0.0
  %635 = vmatpush1.msra.mxu0 %v409
  %636 = vmatprep.subr.mxu0 0.0
  %637 = vmatpush1.msra.mxu0 %v410
  %638 = vmatprep.subr.mxu0 0.0
  %639 = vmatpush1.msra.mxu0 %v411
  %640 = vmatprep.subr.mxu0 0.0
  %641 = vmatpush1.msra.mxu0 %v412
  %642 = vmatprep.subr.mxu0 0.0
  %643 = vmatpush1.msra.mxu0 %v413
  %644 = vmatprep.subr.mxu0 0.0
  %645 = vmatpush1.msra.mxu0 %v414
  %646 = vmatprep.subr.mxu0 0.0
  %647 = vmatpush1.msra.mxu0 %v415
  %648 = vmatprep.mubr.f32.mxu0 %v275
  %649 = vmatmul.mubr.f32.gmra.mrb[0].mxu0 %v274
  %v650 = vpop.f32.mrb[0].mxu0
  %v651 = vadd.f32 %v506, %v650
  %v652 = vpop.f32.mrb[0].mxu0
  %653 = vmatprep.mubr.f32.mxu0 %v280
  %654 = vmatmul.mubr.f32.gmra.mrb[0].mxu0 %v279
  %v655 = vpop.f32.mrb[0].mxu0
  %v656 = vadd.f32 %v511, %v655
  %v657 = vpop.f32.mrb[0].mxu0
  %658 = vmatprep.mubr.f32.mxu0 %v285
  %659 = vmatmul.mubr.f32.gmra.mrb[0].mxu0 %v284
  %v660 = vpop.f32.mrb[0].mxu0
  %v661 = vadd.f32 %v516, %v660
  %v662 = vpop.f32.mrb[0].mxu0
  %663 = vmatprep.mubr.f32.mxu0 %v290
  %664 = vmatmul.mubr.f32.gmra.mrb[0].mxu0 %v289
  %v665 = vpop.f32.mrb[0].mxu0
  %v666 = vadd.f32 %v521, %v665
  %v667 = vpop.f32.mrb[0].mxu0
  %668 = vmatprep.mubr.f32.mxu0 %v295
  %669 = vmatmul.mubr.f32.gmra.mrb[0].mxu0 %v294
  %v670 = vpop.f32.mrb[0].mxu0
  %v671 = vadd.f32 %v526, %v670
  %v672 = vpop.f32.mrb[0].mxu0
  %673 = vmatprep.mubr.f32.mxu0 %v300
  %674 = vmatmul.mubr.f32.gmra.mrb[0].mxu0 %v299
  %v675 = vpop.f32.mrb[0].mxu0
  %v676 = vadd.f32 %v531, %v675
  %v677 = vpop.f32.mrb[0].mxu0
  %678 = vmatprep.mubr.f32.mxu0 %v305
  %679 = vmatmul.mubr.f32.gmra.mrb[0].mxu0 %v304
  %v680 = vpop.f32.mrb[0].mxu0
  %v681 = vadd.f32 %v536, %v680
  %v682 = vpop.f32.mrb[0].mxu0
  %683 = vmatprep.mubr.f32.mxu0 %v310
  %684 = vmatmul.mubr.f32.gmra.mrb[0].mxu0 %v309
  %v685 = vpop.f32.mrb[0].mxu0
  %v686 = vadd.f32 %v541, %v685
  %v687 = vpop.f32.mrb[0].mxu0
  %688 = vmatprep.mubr.f32.mxu0 %v315
  %689 = vmatmul.mubr.f32.gmra.mrb[0].mxu0 %v314
  %v690 = vpop.f32.mrb[0].mxu0
  %v691 = vadd.f32 %v546, %v690
  %v692 = vpop.f32.mrb[0].mxu0
  %693 = vmatprep.mubr.f32.mxu0 %v320
  %694 = vmatmul.mubr.f32.gmra.mrb[0].mxu0 %v319
  %v695 = vpop.f32.mrb[0].mxu0
  %v696 = vadd.f32 %v551, %v695
  %v697 = vpop.f32.mrb[0].mxu0
  %698 = vmatprep.mubr.f32.mxu0 %v325
  %699 = vmatmul.mubr.f32.gmra.mrb[0].mxu0 %v324
  %v700 = vpop.f32.mrb[0].mxu0
  %v701 = vadd.f32 %v556, %v700
  %v702 = vpop.f32.mrb[0].mxu0
  %703 = vmatprep.mubr.f32.mxu0 %v330
  %704 = vmatmul.mubr.f32.gmra.mrb[0].mxu0 %v329
  %v705 = vpop.f32.mrb[0].mxu0
  %v706 = vadd.f32 %v561, %v705
  %v707 = vpop.f32.mrb[0].mxu0
  %708 = vmatprep.mubr.f32.mxu0 %v335
  %709 = vmatmul.mubr.f32.gmra.mrb[0].mxu0 %v334
  %v710 = vpop.f32.mrb[0].mxu0
  %v711 = vadd.f32 %v566, %v710
  %v712 = vpop.f32.mrb[0].mxu0
  %713 = vmatprep.mubr.f32.mxu0 %v340
  %714 = vmatmul.mubr.f32.gmra.mrb[0].mxu0 %v339
  %v715 = vpop.f32.mrb[0].mxu0
  %v716 = vadd.f32 %v571, %v715
  %v717 = vpop.f32.mrb[0].mxu0
  %718 = vmatprep.mubr.f32.mxu0 %v345
  %719 = vmatmul.mubr.f32.gmra.mrb[0].mxu0 %v344
  %v720 = vpop.f32.mrb[0].mxu0
  %v721 = vadd.f32 %v576, %v720
  %v722 = vpop.f32.mrb[0].mxu0
  %723 = vmatprep.mubr.f32.mxu0 %v350
  %724 = vmatmul.mubr.f32.gmra.mrb[0].mxu0 %v349
  %v725 = vpop.f32.mrb[0].mxu0
  %v726 = vadd.f32 %v581, %v725
  %v727 = vpop.f32.mrb[0].mxu0
  %728 = vdwg.mxu0
  %729 = vmatprep.subr.mxu0 0.0
  %730 = vmatpush1.msra.mxu0 %v416
  %731 = vmatprep.subr.mxu0 0.0
  %732 = vmatpush1.msra.mxu0 %v417
  %733 = vmatprep.subr.mxu0 0.0
  %734 = vmatpush1.msra.mxu0 %v418
  %735 = vmatprep.subr.mxu0 0.0
  %736 = vmatpush1.msra.mxu0 %v419
  %737 = vmatprep.subr.mxu0 0.0
  %738 = vmatpush1.msra.mxu0 %v420
  %739 = vmatprep.subr.mxu0 0.0
  %740 = vmatpush1.msra.mxu0 %v421
  %741 = vmatprep.subr.mxu0 0.0
  %742 = vmatpush1.msra.mxu0 %v422
  %743 = vmatprep.subr.mxu0 0.0
  %744 = vmatpush1.msra.mxu0 %v423
  %745 = vmatprep.subr.mxu0 0.0
  %746 = vmatpush1.msra.mxu0 %v424
  %747 = vmatprep.subr.mxu0 0.0
  %748 = vmatpush1.msra.mxu0 %v425
  %749 = vmatprep.subr.mxu0 0.0
  %750 = vmatpush1.msra.mxu0 %v426
  %751 = vmatprep.subr.mxu0 0.0
  %752 = vmatpush1.msra.mxu0 %v427
  %753 = vmatprep.subr.mxu0 0.0
  %754 = vmatpush1.msra.mxu0 %v428
  %755 = vmatprep.subr.mxu0 0.0
  %756 = vmatpush1.msra.mxu0 %v429
  %757 = vmatprep.subr.mxu0 0.0
  %758 = vmatpush1.msra.mxu0 %v430
  %759 = vmatprep.subr.mxu0 0.0
  %760 = vmatpush1.msra.mxu0 %v431
  %761 = vmatprep.subr.mxu0 0.0
  %762 = vmatpush1.msra.mxu0 0.0
  %763 = vmatprep.subr.mxu0 0.0
  %764 = vmatpush1.msra.mxu0 0.0
  %765 = vmatprep.subr.mxu0 0.0
  %766 = vmatpush1.msra.mxu0 0.0
  %767 = vmatprep.subr.mxu0 0.0
  %768 = vmatpush1.msra.mxu0 0.0
  %769 = vmatprep.subr.mxu0 0.0
  %770 = vmatpush1.msra.mxu0 0.0
  %771 = vmatprep.subr.mxu0 0.0
  %772 = vmatpush1.msra.mxu0 0.0
  %773 = vmatprep.subr.mxu0 0.0
  %774 = vmatpush1.msra.mxu0 0.0
  %775 = vmatprep.subr.mxu0 0.0
  %776 = vmatpush1.msra.mxu0 0.0
  %777 = vmatprep.subr.mxu0 0.0
  %778 = vmatpush1.msra.mxu0 0.0
  %779 = vmatprep.subr.mxu0 0.0
  %780 = vmatpush1.msra.mxu0 0.0
  %781 = vmatprep.subr.mxu0 0.0
  %782 = vmatpush1.msra.mxu0 0.0
  %783 = vmatprep.subr.mxu0 0.0
  %784 = vmatpush1.msra.mxu0 0.0
  %785 = vmatprep.subr.mxu0 0.0
  %786 = vmatpush1.msra.mxu0 0.0
  %787 = vmatprep.subr.mxu0 0.0
  %788 = vmatpush1.msra.mxu0 0.0
  %789 = vmatprep.subr.mxu0 0.0
  %790 = vmatpush1.msra.mxu0 0.0
  %791 = vmatprep.subr.mxu0 0.0
  %792 = vmatpush1.msra.mxu0 0.0
  %793 = vmatprep.mubr.f32.mxu0 0.0
  %794 = vmatmul.mubr.f32.gmra.mrb[0].mxu0 %v276
  %v795 = vpop.f32.mrb[0].mxu0
  %v796 = vadd.f32 %v651, %v795
  %v797 = vpop.f32.mrb[0].mxu0
  %798 = vmatprep.mubr.f32.mxu0 0.0
  %799 = vmatmul.mubr.f32.gmra.mrb[0].mxu0 %v281
  %v800 = vpop.f32.mrb[0].mxu0
  %v801 = vadd.f32 %v656, %v800
  %v802 = vpop.f32.mrb[0].mxu0
  %803 = vmatprep.mubr.f32.mxu0 0.0
  %804 = vmatmul.mubr.f32.gmra.mrb[0].mxu0 %v286
  %v805 = vpop.f32.mrb[0].mxu0
  %v806 = vadd.f32 %v661, %v805
  %v807 = vpop.f32.mrb[0].mxu0
  %808 = vmatprep.mubr.f32.mxu0 0.0
  %809 = vmatmul.mubr.f32.gmra.mrb[0].mxu0 %v291
  %v810 = vpop.f32.mrb[0].mxu0
  %v811 = vadd.f32 %v666, %v810
  %v812 = vpop.f32.mrb[0].mxu0
  %813 = vmatprep.mubr.f32.mxu0 0.0
  %814 = vmatmul.mubr.f32.gmra.mrb[0].mxu0 %v296
  %v815 = vpop.f32.mrb[0].mxu0
  %v816 = vadd.f32 %v671, %v815
  %v817 = vpop.f32.mrb[0].mxu0
  %818 = vmatprep.mubr.f32.mxu0 0.0
  %819 = vmatmul.mubr.f32.gmra.mrb[0].mxu0 %v301
  %v820 = vpop.f32.mrb[0].mxu0
  %v821 = vadd.f32 %v676, %v820
  %v822 = vpop.f32.mrb[0].mxu0
  %823 = vmatprep.mubr.f32.mxu0 0.0
  %824 = vmatmul.mubr.f32.gmra.mrb[0].mxu0 %v306
  %v825 = vpop.f32.mrb[0].mxu0
  %v826 = vadd.f32 %v681, %v825
  %v827 = vpop.f32.mrb[0].mxu0
  %828 = vmatprep.mubr.f32.mxu0 0.0
  %829 = vmatmul.mubr.f32.gmra.mrb[0].mxu0 %v311
  %v830 = vpop.f32.mrb[0].mxu0
  %v831 = vadd.f32 %v686, %v830
  %v832 = vpop.f32.mrb[0].mxu0
  %833 = vmatprep.mubr.f32.mxu0 0.0
  %834 = vmatmul.mubr.f32.gmra.mrb[0].mxu0 %v316
  %v835 = vpop.f32.mrb[0].mxu0
  %v836 = vadd.f32 %v691, %v835
  %v837 = vpop.f32.mrb[0].mxu0
  %838 = vmatprep.mubr.f32.mxu0 0.0
  %839 = vmatmul.mubr.f32.gmra.mrb[0].mxu0 %v321
  %v840 = vpop.f32.mrb[0].mxu0
  %v841 = vadd.f32 %v696, %v840
  %v842 = vpop.f32.mrb[0].mxu0
  %843 = vmatprep.mubr.f32.mxu0 0.0
  %844 = vmatmul.mubr.f32.gmra.mrb[0].mxu0 %v326
  %v845 = vpop.f32.mrb[0].mxu0
  %v846 = vadd.f32 %v701, %v845
  %v847 = vpop.f32.mrb[0].mxu0
  %848 = vmatprep.mubr.f32.mxu0 0.0
  %849 = vmatmul.mubr.f32.gmra.mrb[0].mxu0 %v331
  %v850 = vpop.f32.mrb[0].mxu0
  %v851 = vadd.f32 %v706, %v850
  %v852 = vpop.f32.mrb[0].mxu0
  %853 = vmatprep.mubr.f32.mxu0 0.0
  %854 = vmatmul.mubr.f32.gmra.mrb[0].mxu0 %v336
  %v855 = vpop.f32.mrb[0].mxu0
  %v856 = vadd.f32 %v711, %v855
  %v857 = vpop.f32.mrb[0].mxu0
  %858 = vmatprep.mubr.f32.mxu0 0.0
  %859 = vmatmul.mubr.f32.gmra.mrb[0].mxu0 %v341
  %v860 = vpop.f32.mrb[0].mxu0
  %v861 = vadd.f32 %v716, %v860
  %v862 = vpop.f32.mrb[0].mxu0
  %863 = vmatprep.mubr.f32.mxu0 0.0
  %864 = vmatmul.mubr.f32.gmra.mrb[0].mxu0 %v346
  %v865 = vpop.f32.mrb[0].mxu0
  %v866 = vadd.f32 %v721, %v865
  %v867 = vpop.f32.mrb[0].mxu0
  %868 = vmatprep.mubr.f32.mxu0 0.0
  %869 = vmatmul.mubr.f32.gmra.mrb[0].mxu0 %v351
  %v870 = vpop.f32.mrb[0].mxu0
  %v871 = vadd.f32 %v726, %v870
  %v872 = vpop.f32.mrb[0].mxu0
  %873 = vdwg.mxu0
  %v874 = vmax.f32 %v796, 0.0
  %v875 = vmax.f32 %v801, 0.0
  %v876 = vmax.f32 %v806, 0.0
  %v877 = vmax.f32 %v811, 0.0
  %v878 = vmax.f32 %v816, 0.0
  %v879 = vmax.f32 %v821, 0.0
  %v880 = vmax.f32 %v826, 0.0
  %v881 = vmax.f32 %v831, 0.0
  %v882 = vmax.f32 %v836, 0.0
  %v883 = vmax.f32 %v841, 0.0
  %v884 = vmax.f32 %v846, 0.0
  %v885 = vmax.f32 %v851, 0.0
  %v886 = vmax.f32 %v856, 0.0
  %v887 = vmax.f32 %v861, 0.0
  %v888 = vmax.f32 %v866, 0.0
  %v889 = vmax.f32 %v871, 0.0
  %v890 = vld [vmem:[%s3] sm:$0xff]
  %891 = vmatprep.subr.mxu0 0.0
  %892 = vmatpush1.msra.mxu0 %v874
  %893 = vmatprep.subr.mxu0 0.0
  %894 = vmatpush1.msra.mxu0 %v875
  %895 = vmatprep.subr.mxu0 0.0
  %896 = vmatpush1.msra.mxu0 %v876
  %897 = vmatprep.subr.mxu0 0.0
  %898 = vmatpush1.msra.mxu0 %v877
  %899 = vmatprep.subr.mxu0 0.0
  %900 = vmatpush1.msra.mxu0 %v878
  %901 = vmatprep.subr.mxu0 0.0
  %902 = vmatpush1.msra.mxu0 %v879
  %903 = vmatprep.subr.mxu0 0.0
  %904 = vmatpush1.msra.mxu0 %v880
  %905 = vmatprep.subr.mxu0 0.0
  %906 = vmatpush1.msra.mxu0 %v881
  %907 = vmatprep.subr.mxu0 0.0
  %908 = vmatpush1.msra.mxu0 %v882
  %909 = vmatprep.subr.mxu0 0.0
  %910 = vmatpush1.msra.mxu0 %v883
  %911 = vmatprep.subr.mxu0 0.0
  %912 = vmatpush1.msra.mxu0 %v884
  %913 = vmatprep.subr.mxu0 0.0
  %914 = vmatpush1.msra.mxu0 %v885
  %915 = vmatprep.subr.mxu0 0.0
  %916 = vmatpush1.msra.mxu0 %v886
  %917 = vmatprep.subr.mxu0 0.0
  %918 = vmatpush1.msra.mxu0 %v887
  %919 = vmatprep.subr.mxu0 0.0
  %920 = vmatpush1.msra.mxu0 %v888
  %921 = vmatprep.subr.mxu0 0.0
  %922 = vmatpush1.msra.mxu0 %v889
  %923 = vmatprep.subr.mxu0 0.0
  %924 = vmatpush1.msra.mxu0 0.0
  %925 = vmatprep.subr.mxu0 0.0
  %926 = vmatpush1.msra.mxu0 0.0
  %927 = vmatprep.subr.mxu0 0.0
  %928 = vmatpush1.msra.mxu0 0.0
  %929 = vmatprep.subr.mxu0 0.0
  %930 = vmatpush1.msra.mxu0 0.0
  %931 = vmatprep.subr.mxu0 0.0
  %932 = vmatpush1.msra.mxu0 0.0
  %933 = vmatprep.subr.mxu0 0.0
  %934 = vmatpush1.msra.mxu0 0.0
  %935 = vmatprep.subr.mxu0 0.0
  %936 = vmatpush1.msra.mxu0 0.0
  %937 = vmatprep.subr.mxu0 0.0
  %938 = vmatpush1.msra.mxu0 0.0
  %939 = vmatprep.subr.mxu0 0.0
  %940 = vmatpush1.msra.mxu0 0.0
  %941 = vmatprep.subr.mxu0 0.0
  %942 = vmatpush1.msra.mxu0 0.0
  %943 = vmatprep.subr.mxu0 0.0
  %944 = vmatpush1.msra.mxu0 0.0
  %945 = vmatprep.subr.mxu0 0.0
  %946 = vmatpush1.msra.mxu0 0.0
  %947 = vmatprep.subr.mxu0 0.0
  %948 = vmatpush1.msra.mxu0 0.0
  %949 = vmatprep.subr.mxu0 0.0
  %950 = vmatpush1.msra.mxu0 0.0
  %951 = vmatprep.subr.mxu0 0.0
  %952 = vmatpush1.msra.mxu0 0.0
  %953 = vmatprep.subr.mxu0 0.0
  %954 = vmatpush1.msra.mxu0 0.0
  %955 = vmatprep.mubr.f32.mxu0 0.0
  %956 = vmatmul.mubr.f32.gmra.mrb[0].mxu0 %v890
  %v957 = vpop.f32.mrb[0].mxu0
  %v958 = vadd.f32 0.0, %v957
  %v959 = vpop.f32.mrb[0].mxu0
  %960 = vdwg.mxu0
  %v961 = vld [vmem:[%s11] sm:$0xff]
  %v962 = vld [vmem:[%s11 + $0x8] sm:$0xff]
  %v963 = vld [vmem:[%s11 + $0x10] sm:$0xff]
  %v964 = vld [vmem:[%s11 + $0x18] sm:$0xff]
  %v965 = vld [vmem:[%s11 + $0x20] sm:$0xff]
  %v966 = vld [vmem:[%s11 + $0x28] sm:$0xff]
  %v967 = vld [vmem:[%s11 + $0x30] sm:$0xff]
  %v968 = vld [vmem:[%s11 + $0x38] sm:$0xff]
  %v969 = vld [vmem:[%s11 + $0x40] sm:$0xff]
  %v970 = vld [vmem:[%s11 + $0x48] sm:$0xff]
  %v971 = vld [vmem:[%s11 + $0x50] sm:$0xff]
  %v972 = vld [vmem:[%s11 + $0x58] sm:$0xff]
  %v973 = vld [vmem:[%s11 + $0x60] sm:$0xff]
  %v974 = vld [vmem:[%s11 + $0x68] sm:$0xff]
  %v975 = vld [vmem:[%s11 + $0x70] sm:$0xff]
  %v976 = vld [vmem:[%s11 + $0x78] sm:$0xff]
  %v977 = vld [vmem:[%s11 + $0x80] sm:$0xff]
  %v978 = vld [vmem:[%s11 + $0x88] sm:$0xff]
  %v979 = vld [vmem:[%s11 + $0x90] sm:$0xff]
  %v980 = vld [vmem:[%s11 + $0x98] sm:$0xff]
  %v981 = vld [vmem:[%s11 + $0xa0] sm:$0xff]
  %v982 = vld [vmem:[%s11 + $0xa8] sm:$0xff]
  %v983 = vld [vmem:[%s11 + $0xb0] sm:$0xff]
  %v984 = vld [vmem:[%s11 + $0xb8] sm:$0xff]
  %v985 = vld [vmem:[%s11 + $0xc0] sm:$0xff]
  %v986 = vld [vmem:[%s11 + $0xc8] sm:$0xff]
  %v987 = vld [vmem:[%s11 + $0xd0] sm:$0xff]
  %v988 = vld [vmem:[%s11 + $0xd8] sm:$0xff]
  %v989 = vld [vmem:[%s11 + $0xe0] sm:$0xff]
  %v990 = vld [vmem:[%s11 + $0xe8] sm:$0xff]
  %v991 = vld [vmem:[%s11 + $0xf0] sm:$0xff]
  %v992 = vld [vmem:[%s11 + $0xf8] sm:$0xff]
  %993 = vmatprep.subr.mxu0 %v962
  %994 = vmatpush1.msra.mxu0 %v961
  %995 = vmatprep.subr.mxu0 %v964
  %996 = vmatpush1.msra.mxu0 %v963
  %997 = vmatprep.subr.mxu0 %v966
  %998 = vmatpush1.msra.mxu0 %v965
  %999 = vmatprep.subr.mxu0 %v968
  %1000 = vmatpush1.msra.mxu0 %v967
  %1001 = vmatprep.subr.mxu0 %v970
  %1002 = vmatpush1.msra.mxu0 %v969
  %1003 = vmatprep.subr.mxu0 %v972
  %1004 = vmatpush1.msra.mxu0 %v971
  %1005 = vmatprep.subr.mxu0 %v974
  %1006 = vmatpush1.msra.mxu0 %v973
  %1007 = vmatprep.subr.mxu0 %v976
  %1008 = vmatpush1.msra.mxu0 %v975
  %1009 = vmatprep.subr.mxu0 %v978
  %1010 = vmatpush1.msra.mxu0 %v977
  %1011 = vmatprep.subr.mxu0 %v980
  %1012 = vmatpush1.msra.mxu0 %v979
  %1013 = vmatprep.subr.mxu0 %v982
  %1014 = vmatpush1.msra.mxu0 %v981
  %1015 = vmatprep.subr.mxu0 %v984
  %1016 = vmatpush1.msra.mxu0 %v983
  %1017 = vmatprep.subr.mxu0 %v986
  %1018 = vmatpush1.msra.mxu0 %v985
  %1019 = vmatprep.subr.mxu0 %v988
  %1020 = vmatpush1.msra.mxu0 %v987
  %1021 = vmatprep.subr.mxu0 %v990
  %1022 = vmatpush1.msra.mxu0 %v989
  %1023 = vmatprep.subr.mxu0 %v992
  %1024 = vmatpush1.msra.mxu0 %v991
  %1025 = vmatprep.subr.mxu0 0.0
  %1026 = vmatpush1.msra.mxu0 0.0
  %1027 = vmatprep.subr.mxu0 0.0
  %1028 = vmatpush1.msra.mxu0 0.0
  %1029 = vmatprep.subr.mxu0 0.0
  %1030 = vmatpush1.msra.mxu0 0.0
  %1031 = vmatprep.subr.mxu0 0.0
  %1032 = vmatpush1.msra.mxu0 0.0
  %1033 = vmatprep.subr.mxu0 0.0
  %1034 = vmatpush1.msra.mxu0 0.0
  %1035 = vmatprep.subr.mxu0 0.0
  %1036 = vmatpush1.msra.mxu0 0.0
  %1037 = vmatprep.subr.mxu0 0.0
  %1038 = vmatpush1.msra.mxu0 0.0
  %1039 = vmatprep.subr.mxu0 0.0
  %1040 = vmatpush1.msra.mxu0 0.0
  %1041 = vmatprep.subr.mxu0 0.0
  %1042 = vmatpush1.msra.mxu0 0.0
  %1043 = vmatprep.subr.mxu0 0.0
  %1044 = vmatpush1.msra.mxu0 0.0
  %1045 = vmatprep.subr.mxu0 0.0
  %1046 = vmatpush1.msra.mxu0 0.0
  %1047 = vmatprep.subr.mxu0 0.0
  %1048 = vmatpush1.msra.mxu0 0.0
  %1049 = vmatprep.subr.mxu0 0.0
  %1050 = vmatpush1.msra.mxu0 0.0
  %1051 = vmatprep.subr.mxu0 0.0
  %1052 = vmatpush1.msra.mxu0 0.0
  %1053 = vmatprep.subr.mxu0 0.0
  %1054 = vmatpush1.msra.mxu0 0.0
  %1055 = vmatprep.subr.mxu0 0.0
  %1056 = vmatpush1.msra.mxu0 0.0
  %1057 = vmatprep.mubr.f32.mxu0 0.0
  %1058 = vmatmul.mubr.f32.gmra.mrb[0].mxu0 %v269
  %v1059 = vpop.f32.mrb[0].mxu0
  %v1060 = vadd.f32 0.0, %v1059
  %v1061 = vpop.f32.mrb[0].mxu0
  %v1062 = vadd.f32 0.0, %v1061
  %1063 = vdwg.mxu0
  %v1064 = vld [vmem:[%s12] sm:$0xff]
  %v1065 = vld [vmem:[%s12 + $0x8] sm:$0xff]
  %v1066 = vld [vmem:[%s12 + $0x10] sm:$0xff]
  %v1067 = vld [vmem:[%s12 + $0x18] sm:$0xff]
  %v1068 = vld [vmem:[%s12 + $0x20] sm:$0xff]
  %v1069 = vld [vmem:[%s12 + $0x28] sm:$0xff]
  %v1070 = vld [vmem:[%s12 + $0x30] sm:$0xff]
  %v1071 = vld [vmem:[%s12 + $0x38] sm:$0xff]
  %v1072 = vld [vmem:[%s12 + $0x40] sm:$0xff]
  %v1073 = vld [vmem:[%s12 + $0x48] sm:$0xff]
  %v1074 = vld [vmem:[%s12 + $0x50] sm:$0xff]
  %v1075 = vld [vmem:[%s12 + $0x58] sm:$0xff]
  %v1076 = vld [vmem:[%s12 + $0x60] sm:$0xff]
  %v1077 = vld [vmem:[%s12 + $0x68] sm:$0xff]
  %v1078 = vld [vmem:[%s12 + $0x70] sm:$0xff]
  %v1079 = vld [vmem:[%s12 + $0x78] sm:$0xff]
  %v1080 = vld [vmem:[%s12 + $0x80] sm:$0xff]
  %v1081 = vld [vmem:[%s12 + $0x88] sm:$0xff]
  %v1082 = vld [vmem:[%s12 + $0x90] sm:$0xff]
  %v1083 = vld [vmem:[%s12 + $0x98] sm:$0xff]
  %v1084 = vld [vmem:[%s12 + $0xa0] sm:$0xff]
  %v1085 = vld [vmem:[%s12 + $0xa8] sm:$0xff]
  %v1086 = vld [vmem:[%s12 + $0xb0] sm:$0xff]
  %v1087 = vld [vmem:[%s12 + $0xb8] sm:$0xff]
  %v1088 = vld [vmem:[%s12 + $0xc0] sm:$0xff]
  %v1089 = vld [vmem:[%s12 + $0xc8] sm:$0xff]
  %v1090 = vld [vmem:[%s12 + $0xd0] sm:$0xff]
  %v1091 = vld [vmem:[%s12 + $0xd8] sm:$0xff]
  %v1092 = vld [vmem:[%s12 + $0xe0] sm:$0xff]
  %v1093 = vld [vmem:[%s12 + $0xe8] sm:$0xff]
  %v1094 = vld [vmem:[%s12 + $0xf0] sm:$0xff]
  %v1095 = vld [vmem:[%s12 + $0xf8] sm:$0xff]
  %1096 = vmatprep.subr.mxu0 %v1065
  %1097 = vmatpush1.msra.mxu0 %v1064
  %1098 = vmatprep.subr.mxu0 %v1067
  %1099 = vmatpush1.msra.mxu0 %v1066
  %1100 = vmatprep.subr.mxu0 %v1069
  %1101 = vmatpush1.msra.mxu0 %v1068
  %1102 = vmatprep.subr.mxu0 %v1071
  %1103 = vmatpush1.msra.mxu0 %v1070
  %1104 = vmatprep.subr.mxu0 %v1073
  %1105 = vmatpush1.msra.mxu0 %v1072
  %1106 = vmatprep.subr.mxu0 %v1075
  %1107 = vmatpush1.msra.mxu0 %v1074
  %1108 = vmatprep.subr.mxu0 %v1077
  %1109 = vmatpush1.msra.mxu0 %v1076
  %1110 = vmatprep.subr.mxu0 %v1079
  %1111 = vmatpush1.msra.mxu0 %v1078
  %1112 = vmatprep.subr.mxu0 %v1081
  %1113 = vmatpush1.msra.mxu0 %v1080
  %1114 = vmatprep.subr.mxu0 %v1083
  %1115 = vmatpush1.msra.mxu0 %v1082
  %1116 = vmatprep.subr.mxu0 %v1085
  %1117 = vmatpush1.msra.mxu0 %v1084
  %1118 = vmatprep.subr.mxu0 %v1087
  %1119 = vmatpush1.msra.mxu0 %v1086
  %1120 = vmatprep.subr.mxu0 %v1089
  %1121 = vmatpush1.msra.mxu0 %v1088
  %1122 = vmatprep.subr.mxu0 %v1091
  %1123 = vmatpush1.msra.mxu0 %v1090
  %1124 = vmatprep.subr.mxu0 %v1093
  %1125 = vmatpush1.msra.mxu0 %v1092
  %1126 = vmatprep.subr.mxu0 %v1095
  %1127 = vmatpush1.msra.mxu0 %v1094
  %1128 = vmatprep.subr.mxu0 0.0
  %1129 = vmatpush1.msra.mxu0 0.0
  %1130 = vmatprep.subr.mxu0 0.0
  %1131 = vmatpush1.msra.mxu0 0.0
  %1132 = vmatprep.subr.mxu0 0.0
  %1133 = vmatpush1.msra.mxu0 0.0
  %1134 = vmatprep.subr.mxu0 0.0
  %1135 = vmatpush1.msra.mxu0 0.0
  %1136 = vmatprep.subr.mxu0 0.0
  %1137 = vmatpush1.msra.mxu0 0.0
  %1138 = vmatprep.subr.mxu0 0.0
  %1139 = vmatpush1.msra.mxu0 0.0
  %1140 = vmatprep.subr.mxu0 0.0
  %1141 = vmatpush1.msra.mxu0 0.0
  %1142 = vmatprep.subr.mxu0 0.0
  %1143 = vmatpush1.msra.mxu0 0.0
  %1144 = vmatprep.subr.mxu0 0.0
  %1145 = vmatpush1.msra.mxu0 0.0
  %1146 = vmatprep.subr.mxu0 0.0
  %1147 = vmatpush1.msra.mxu0 0.0
  %1148 = vmatprep.subr.mxu0 0.0
  %1149 = vmatpush1.msra.mxu0 0.0
  %1150 = vmatprep.subr.mxu0 0.0
  %1151 = vmatpush1.msra.mxu0 0.0
  %1152 = vmatprep.subr.mxu0 0.0
  %1153 = vmatpush1.msra.mxu0 0.0
  %1154 = vmatprep.subr.mxu0 0.0
  %1155 = vmatpush1.msra.mxu0 0.0
  %1156 = vmatprep.subr.mxu0 0.0
  %1157 = vmatpush1.msra.mxu0 0.0
  %1158 = vmatprep.subr.mxu0 0.0
  %1159 = vmatpush1.msra.mxu0 0.0
  %1160 = vmatprep.mubr.f32.mxu0 0.0
  %1161 = vmatmul.mubr.f32.gmra.mrb[0].mxu0 %v958
  %v1162 = vpop.f32.mrb[0].mxu0
  %v1163 = vadd.f32 0.0, %v1162
  %v1164 = vpop.f32.mrb[0].mxu0
  %v1165 = vadd.f32 0.0, %v1164
  %1166 = vdwg.mxu0
  %v1167 = vld [vmem:[%s8] sm:$0xff]
  %v1168 = vld [vmem:[%s8 + $0x8] sm:$0xff]
  %v1169 = vld [vmem:[%s8 + $0x10] sm:$0xff]
  %v1170 = vld [vmem:[%s8 + $0x18] sm:$0xff]
  %v1171 = vld [vmem:[%s8 + $0x20] sm:$0xff]
  %v1172 = vld [vmem:[%s8 + $0x28] sm:$0xff]
  %v1173 = vld [vmem:[%s8 + $0x30] sm:$0xff]
  %v1174 = vld [vmem:[%s8 + $0x38] sm:$0xff]
  %v1175 = vld [vmem:[%s8 + $0x40] sm:$0xff]
  %v1176 = vld [vmem:[%s8 + $0x48] sm:$0xff]
  %v1177 = vld [vmem:[%s8 + $0x50] sm:$0xff]
  %v1178 = vld [vmem:[%s8 + $0x58] sm:$0xff]
  %v1179 = vld [vmem:[%s8 + $0x60] sm:$0xff]
  %v1180 = vld [vmem:[%s8 + $0x68] sm:$0xff]
  %v1181 = vld [vmem:[%s8 + $0x70] sm:$0xff]
  %v1182 = vld [vmem:[%s8 + $0x78] sm:$0xff]
  %v1183 = vld [vmem:[%s9] sm:$0xff]
  %v1184 = vld [vmem:[%s9 + $0x8] sm:$0xff]
  %v1185 = vld [vmem:[%s9 + $0x10] sm:$0xff]
  %v1186 = vld [vmem:[%s9 + $0x18] sm:$0xff]
  %v1187 = vld [vmem:[%s9 + $0x20] sm:$0xff]
  %v1188 = vld [vmem:[%s9 + $0x28] sm:$0xff]
  %v1189 = vld [vmem:[%s9 + $0x30] sm:$0xff]
  %v1190 = vld [vmem:[%s9 + $0x38] sm:$0xff]
  %v1191 = vld [vmem:[%s9 + $0x40] sm:$0xff]
  %v1192 = vld [vmem:[%s9 + $0x48] sm:$0xff]
  %v1193 = vld [vmem:[%s9 + $0x50] sm:$0xff]
  %v1194 = vld [vmem:[%s9 + $0x58] sm:$0xff]
  %v1195 = vld [vmem:[%s9 + $0x60] sm:$0xff]
  %v1196 = vld [vmem:[%s9 + $0x68] sm:$0xff]
  %v1197 = vld [vmem:[%s9 + $0x70] sm:$0xff]
  %v1198 = vld [vmem:[%s9 + $0x78] sm:$0xff]
  %1199 = vmatprep.subr.mxu0 0.0
  %1200 = vmatpush1.msra.mxu0 %v1183
  %1201 = vmatprep.subr.mxu0 0.0
  %1202 = vmatpush1.msra.mxu0 %v1184
  %1203 = vmatprep.subr.mxu0 0.0
  %1204 = vmatpush1.msra.mxu0 %v1185
  %1205 = vmatprep.subr.mxu0 0.0
  %1206 = vmatpush1.msra.mxu0 %v1186
  %1207 = vmatprep.subr.mxu0 0.0
  %1208 = vmatpush1.msra.mxu0 %v1187
  %1209 = vmatprep.subr.mxu0 0.0
  %1210 = vmatpush1.msra.mxu0 %v1188
  %1211 = vmatprep.subr.mxu0 0.0
  %1212 = vmatpush1.msra.mxu0 %v1189
  %1213 = vmatprep.subr.mxu0 0.0
  %1214 = vmatpush1.msra.mxu0 %v1190
  %1215 = vmatprep.subr.mxu0 0.0
  %1216 = vmatpush1.msra.mxu0 %v1191
  %1217 = vmatprep.subr.mxu0 0.0
  %1218 = vmatpush1.msra.mxu0 %v1192
  %1219 = vmatprep.subr.mxu0 0.0
  %1220 = vmatpush1.msra.mxu0 %v1193
  %1221 = vmatprep.subr.mxu0 0.0
  %1222 = vmatpush1.msra.mxu0 %v1194
  %1223 = vmatprep.subr.mxu0 0.0
  %1224 = vmatpush1.msra.mxu0 %v1195
  %1225 = vmatprep.subr.mxu0 0.0
  %1226 = vmatpush1.msra.mxu0 %v1196
  %1227 = vmatprep.subr.mxu0 0.0
  %1228 = vmatpush1.msra.mxu0 %v1197
  %1229 = vmatprep.subr.mxu0 0.0
  %1230 = vmatpush1.msra.mxu0 %v1198
  %1231 = vmatprep.subr.mxu0 0.0
  %1232 = vmatpush1.msra.mxu0 0.0
  %1233 = vmatprep.subr.mxu0 0.0
  %1234 = vmatpush1.msra.mxu0 0.0
  %1235 = vmatprep.subr.mxu0 0.0
  %1236 = vmatpush1.msra.mxu0 0.0
  %1237 = vmatprep.subr.mxu0 0.0
  %1238 = vmatpush1.msra.mxu0 0.0
  %1239 = vmatprep.subr.mxu0 0.0
  %1240 = vmatpush1.msra.mxu0 0.0
  %1241 = vmatprep.subr.mxu0 0.0
  %1242 = vmatpush1.msra.mxu0 0.0
  %1243 = vmatprep.subr.mxu0 0.0
  %1244 = vmatpush1.msra.mxu0 0.0
  %1245 = vmatprep.subr.mxu0 0.0
  %1246 = vmatpush1.msra.mxu0 0.0
  %1247 = vmatprep.subr.mxu0 0.0
  %1248 = vmatpush1.msra.mxu0 0.0
  %1249 = vmatprep.subr.mxu0 0.0
  %1250 = vmatpush1.msra.mxu0 0.0
  %1251 = vmatprep.subr.mxu0 0.0
  %1252 = vmatpush1.msra.mxu0 0.0
  %1253 = vmatprep.subr.mxu0 0.0
  %1254 = vmatpush1.msra.mxu0 0.0
  %1255 = vmatprep.subr.mxu0 0.0
  %1256 = vmatpush1.msra.mxu0 0.0
  %1257 = vmatprep.subr.mxu0 0.0
  %1258 = vmatpush1.msra.mxu0 0.0
  %1259 = vmatprep.subr.mxu0 0.0
  %1260 = vmatpush1.msra.mxu0 0.0
  %1261 = vmatprep.subr.mxu0 0.0
  %1262 = vmatpush1.msra.mxu0 0.0
  %1263 = vmatprep.mubr.f32.mxu0 0.0
  %1264 = vmatmul.mubr.f32.gmra.mrb[0].mxu0 %v958
  %v1265 = vpop.f32.mrb[0].mxu0
  %v1266 = vadd.f32 0.0, %v1265
  %v1267 = vpop.f32.mrb[0].mxu0
  %1268 = vdwg.mxu0
  %1269 = vmatprep.subr.mxu0 0.0
  %1270 = vmatpush1.msra.mxu0 %v1167
  %1271 = vmatprep.subr.mxu0 0.0
  %1272 = vmatpush1.msra.mxu0 %v1168
  %1273 = vmatprep.subr.mxu0 0.0
  %1274 = vmatpush1.msra.mxu0 %v1169
  %1275 = vmatprep.subr.mxu0 0.0
  %1276 = vmatpush1.msra.mxu0 %v1170
  %1277 = vmatprep.subr.mxu0 0.0
  %1278 = vmatpush1.msra.mxu0 %v1171
  %1279 = vmatprep.subr.mxu0 0.0
  %1280 = vmatpush1.msra.mxu0 %v1172
  %1281 = vmatprep.subr.mxu0 0.0
  %1282 = vmatpush1.msra.mxu0 %v1173
  %1283 = vmatprep.subr.mxu0 0.0
  %1284 = vmatpush1.msra.mxu0 %v1174
  %1285 = vmatprep.subr.mxu0 0.0
  %1286 = vmatpush1.msra.mxu0 %v1175
  %1287 = vmatprep.subr.mxu0 0.0
  %1288 = vmatpush1.msra.mxu0 %v1176
  %1289 = vmatprep.subr.mxu0 0.0
  %1290 = vmatpush1.msra.mxu0 %v1177
  %1291 = vmatprep.subr.mxu0 0.0
  %1292 = vmatpush1.msra.mxu0 %v1178
  %1293 = vmatprep.subr.mxu0 0.0
  %1294 = vmatpush1.msra.mxu0 %v1179
  %1295 = vmatprep.subr.mxu0 0.0
  %1296 = vmatpush1.msra.mxu0 %v1180
  %1297 = vmatprep.subr.mxu0 0.0
  %1298 = vmatpush1.msra.mxu0 %v1181
  %1299 = vmatprep.subr.mxu0 0.0
  %1300 = vmatpush1.msra.mxu0 %v1182
  %1301 = vmatprep.subr.mxu0 0.0
  %1302 = vmatpush1.msra.mxu0 0.0
  %1303 = vmatprep.subr.mxu0 0.0
  %1304 = vmatpush1.msra.mxu0 0.0
  %1305 = vmatprep.subr.mxu0 0.0
  %1306 = vmatpush1.msra.mxu0 0.0
  %1307 = vmatprep.subr.mxu0 0.0
  %1308 = vmatpush1.msra.mxu0 0.0
  %1309 = vmatprep.subr.mxu0 0.0
  %1310 = vmatpush1.msra.mxu0 0.0
  %1311 = vmatprep.subr.mxu0 0.0
  %1312 = vmatpush1.msra.mxu0 0.0
  %1313 = vmatprep.subr.mxu0 0.0
  %1314 = vmatpush1.msra.mxu0 0.0
  %1315 = vmatprep.subr.mxu0 0.0
  %1316 = vmatpush1.msra.mxu0 0.0
  %1317 = vmatprep.subr.mxu0 0.0
  %1318 = vmatpush1.msra.mxu0 0.0
  %1319 = vmatprep.subr.mxu0 0.0
  %1320 = vmatpush1.msra.mxu0 0.0
  %1321 = vmatprep.subr.mxu0 0.0
  %1322 = vmatpush1.msra.mxu0 0.0
  %1323 = vmatprep.subr.mxu0 0.0
  %1324 = vmatpush1.msra.mxu0 0.0
  %1325 = vmatprep.subr.mxu0 0.0
  %1326 = vmatpush1.msra.mxu0 0.0
  %1327 = vmatprep.subr.mxu0 0.0
  %1328 = vmatpush1.msra.mxu0 0.0
  %1329 = vmatprep.subr.mxu0 0.0
  %1330 = vmatpush1.msra.mxu0 0.0
  %1331 = vmatprep.subr.mxu0 0.0
  %1332 = vmatpush1.msra.mxu0 0.0
  %1333 = vmatprep.mubr.f32.mxu0 0.0
  %1334 = vmatmul.mubr.f32.gmra.mrb[0].mxu0 %v269
  %v1335 = vpop.f32.mrb[0].mxu0
  %v1336 = vadd.f32 %v1266, %v1335
  %v1337 = vpop.f32.mrb[0].mxu0
  %1338 = vdwg.mxu0
  %v1339 = vld [vmem:[%s10] sm:$0x1]
  %v1341 = vlaneseq
  %v1342 = vshrl.u32 %v1341, 7
  %v1343 = vsub.s32 0, %v1342
  %v1344 = vrot.slane %v1339, %v1343
  %v1346 = vadd.f32 %v1336, %v1344
  %1348 = vrot.lane.b32.xlu0 %v1346, 1
  %v1349 = vpop.permute.xlu0 %1348
  %v1351 = vsub.f32 %v1346, %v1349
  %v1352 = vmul.f32 %v1351, 1.442695
  %v1353 = vpow.pop %v1352
  %v1354 = vadd.f32 %v1353, 1.0
  %v1355 = vrcp.pop %v1354
  %v1356 = vmul.f32 1.0, %v1355
  %v1357 = vsub.f32 1.0, %v1356
  %1359 = vset.pattern.permute.xlu0 1
  %1360 = vperm.xlu0 %1359, %v1356
  %v1361 = vpop.permute.xlu0 %1360
  %v1363 = vmul.f32 %v1361, %v1060
  %v1364 = vmul.f32 %v1361, %v1062
  %1366 = vset.pattern.permute.xlu0 1
  %1367 = vperm.xlu0 %1366, %v1357
  %v1368 = vpop.permute.xlu0 %1367
  %v1370 = vmul.f32 %v1368, %v1163
  %v1371 = vmul.f32 %v1368, %v1165
  %v1372 = vadd.f32 %v1363, %v1370
  %v1373 = vadd.f32 %v1364, %v1371
  %v1374 = vld [vmem:[%s13] sm:$0x3]
  %v1376 = vlaneseq
  %v1377 = vshrl.u32 %v1376, 7
  %v1378 = vsub.s32 0, %v1377
  %v1379 = vrot.slane %v1374, %v1378
  %v1380 = vlaneseq
  %v1381 = vshrl.u32 %v1380, 7
  %v1382 = vsub.s32 1, %v1381
  %v1383 = vrot.slane %v1374, %v1382
  %v1386 = vadd.f32 %v1372, %v1379
  %v1387 = vadd.f32 %v1373, %v1383
  %v1388 = vld [vmem:[%s14] sm:$0xff]
  %v1389 = vld [vmem:[%s14 + $0x8] sm:$0xff]
  %v1390 = vld [vmem:[%s14 + $0x10] sm:$0xff]
  %v1391 = vld [vmem:[%s14 + $0x18] sm:$0xff]
  %v1392 = vld [vmem:[%s14 + $0x20] sm:$0xff]
  %v1393 = vld [vmem:[%s14 + $0x28] sm:$0xff]
  %v1394 = vld [vmem:[%s14 + $0x30] sm:$0xff]
  %v1395 = vld [vmem:[%s14 + $0x38] sm:$0xff]
  %v1396 = vld [vmem:[%s14 + $0x40] sm:$0xff]
  %v1397 = vld [vmem:[%s14 + $0x48] sm:$0xff]
  %v1398 = vld [vmem:[%s14 + $0x50] sm:$0xff]
  %v1399 = vld [vmem:[%s14 + $0x58] sm:$0xff]
  %v1400 = vld [vmem:[%s14 + $0x60] sm:$0xff]
  %v1401 = vld [vmem:[%s14 + $0x68] sm:$0xff]
  %v1402 = vld [vmem:[%s14 + $0x70] sm:$0xff]
  %v1403 = vld [vmem:[%s14 + $0x78] sm:$0xff]
  %v1404 = vld [vmem:[%s14 + $0x80] sm:$0xff]
  %v1405 = vld [vmem:[%s14 + $0x88] sm:$0xff]
  %v1406 = vld [vmem:[%s14 + $0x90] sm:$0xff]
  %v1407 = vld [vmem:[%s14 + $0x98] sm:$0xff]
  %v1408 = vld [vmem:[%s14 + $0xa0] sm:$0xff]
  %v1409 = vld [vmem:[%s14 + $0xa8] sm:$0xff]
  %v1410 = vld [vmem:[%s14 + $0xb0] sm:$0xff]
  %v1411 = vld [vmem:[%s14 + $0xb8] sm:$0xff]
  %v1412 = vld [vmem:[%s14 + $0xc0] sm:$0xff]
  %v1413 = vld [vmem:[%s14 + $0xc8] sm:$0xff]
  %v1414 = vld [vmem:[%s14 + $0xd0] sm:$0xff]
  %v1415 = vld [vmem:[%s14 + $0xd8] sm:$0xff]
  %v1416 = vld [vmem:[%s14 + $0xe0] sm:$0xff]
  %v1417 = vld [vmem:[%s14 + $0xe8] sm:$0xff]
  %v1418 = vld [vmem:[%s14 + $0xf0] sm:$0xff]
  %v1419 = vld [vmem:[%s14 + $0xf8] sm:$0xff]
  %v1420 = vld [vmem:[%s15] sm:$0x1]
  %v1422 = vlaneseq
  %v1423 = vshrl.u32 %v1422, 7
  %v1424 = vsub.s32 0, %v1423
  %v1425 = vrot.slane %v1420, %v1424
  %1427 = vmatprep.subr.mxu0 0.0
  %1428 = vmatpush1.msra.mxu0 %v1388
  %1429 = vmatprep.subr.mxu0 0.0
  %1430 = vmatpush1.msra.mxu0 %v1389
  %1431 = vmatprep.subr.mxu0 0.0
  %1432 = vmatpush1.msra.mxu0 %v1390
  %1433 = vmatprep.subr.mxu0 0.0
  %1434 = vmatpush1.msra.mxu0 %v1391
  %1435 = vmatprep.subr.mxu0 0.0
  %1436 = vmatpush1.msra.mxu0 %v1392
  %1437 = vmatprep.subr.mxu0 0.0
  %1438 = vmatpush1.msra.mxu0 %v1393
  %1439 = vmatprep.subr.mxu0 0.0
  %1440 = vmatpush1.msra.mxu0 %v1394
  %1441 = vmatprep.subr.mxu0 0.0
  %1442 = vmatpush1.msra.mxu0 %v1395
  %1443 = vmatprep.subr.mxu0 0.0
  %1444 = vmatpush1.msra.mxu0 %v1396
  %1445 = vmatprep.subr.mxu0 0.0
  %1446 = vmatpush1.msra.mxu0 %v1397
  %1447 = vmatprep.subr.mxu0 0.0
  %1448 = vmatpush1.msra.mxu0 %v1398
  %1449 = vmatprep.subr.mxu0 0.0
  %1450 = vmatpush1.msra.mxu0 %v1399
  %1451 = vmatprep.subr.mxu0 0.0
  %1452 = vmatpush1.msra.mxu0 %v1400
  %1453 = vmatprep.subr.mxu0 0.0
  %1454 = vmatpush1.msra.mxu0 %v1401
  %1455 = vmatprep.subr.mxu0 0.0
  %1456 = vmatpush1.msra.mxu0 %v1402
  %1457 = vmatprep.subr.mxu0 0.0
  %1458 = vmatpush1.msra.mxu0 %v1403
  %1459 = vmatprep.subr.mxu0 0.0
  %1460 = vmatpush1.msra.mxu0 %v1404
  %1461 = vmatprep.subr.mxu0 0.0
  %1462 = vmatpush1.msra.mxu0 %v1405
  %1463 = vmatprep.subr.mxu0 0.0
  %1464 = vmatpush1.msra.mxu0 %v1406
  %1465 = vmatprep.subr.mxu0 0.0
  %1466 = vmatpush1.msra.mxu0 %v1407
  %1467 = vmatprep.subr.mxu0 0.0
  %1468 = vmatpush1.msra.mxu0 %v1408
  %1469 = vmatprep.subr.mxu0 0.0
  %1470 = vmatpush1.msra.mxu0 %v1409
  %1471 = vmatprep.subr.mxu0 0.0
  %1472 = vmatpush1.msra.mxu0 %v1410
  %1473 = vmatprep.subr.mxu0 0.0
  %1474 = vmatpush1.msra.mxu0 %v1411
  %1475 = vmatprep.subr.mxu0 0.0
  %1476 = vmatpush1.msra.mxu0 %v1412
  %1477 = vmatprep.subr.mxu0 0.0
  %1478 = vmatpush1.msra.mxu0 %v1413
  %1479 = vmatprep.subr.mxu0 0.0
  %1480 = vmatpush1.msra.mxu0 %v1414
  %1481 = vmatprep.subr.mxu0 0.0
  %1482 = vmatpush1.msra.mxu0 %v1415
  %1483 = vmatprep.subr.mxu0 0.0
  %1484 = vmatpush1.msra.mxu0 %v1416
  %1485 = vmatprep.subr.mxu0 0.0
  %1486 = vmatpush1.msra.mxu0 %v1417
  %1487 = vmatprep.subr.mxu0 0.0
  %1488 = vmatpush1.msra.mxu0 %v1418
  %1489 = vmatprep.subr.mxu0 0.0
  %1490 = vmatpush1.msra.mxu0 %v1419
  %1491 = vmatprep.mubr.f32.mxu0 %v1387
  %1492 = vmatmul.mubr.f32.gmra.mrb[0].mxu0 %v1386
  %v1493 = vpop.f32.mrb[0].mxu0
  %v1494 = vadd.f32 %v1425, %v1493
  %v1495 = vpop.f32.mrb[0].mxu0
  %1496 = vdwg.mxu0
  %1497 = vst [vmem:[%s16] sm:$0xff] %v1494
  // Predicated region
  $region66: #{forward.1} parent=0 // pred_check
    _
  $region67: #{forward.1} parent=0 // pred_check_branch
    %1499 = sbr.rel (0) target = $region69
  $region68: #{forward.1} parent=0 // pred_region
    _
  $region69: #{forward.1} parent=0 // pred_fallthru
    _
  // Predicated region
  $region70: #{forward.1} parent=0 // pred_check
    _
  $region71: #{forward.1} parent=0 // pred_check_branch
    %1501 = sbr.rel (0) target = $region73
  $region72: #{forward.1} parent=0 // pred_region
    _
  $region73: #{forward.1} parent=0 // pred_fallthru
    _

</llo_original>
